<compile_context>
chip_gen: v7x
topology: tpu7x:2x2x1
jax: 0.10.0
libtpu: 0.0.40
codegen_flags: <defaults>
</compile_context>

<pallas_src>
import functools
import math

import jax
import jax.numpy as jnp
from jax import lax
from jax.experimental import pallas as pl
from jax.experimental.pallas import tpu as pltpu


# -----------------------------------------------------------------------------
# Kernel: feature_fusion (Linear+ReLU) -> 1-layer LSTM -> fused output heads
#         latlon: Tanh ; day/hour: Softmax(dim=-1) (masked inside padded slab)
# -----------------------------------------------------------------------------
def generator_kernel(
    x_ref,                       # (T*Bt, N) bf16   noise, time-major within the batch tile
    wf_ref, bf_ref,              # (N, L) bf16, (1, L) f32       feature_fusion Linear
    wih_ref, whh_ref, b_ref,     # (L, 4L) bf16, (L, 4L) bf16, (1, 4L) f32  LSTM (i,f,o,g)
    wheads_ref, bheads_ref,      # (L, Wpad) bf16, (1, Wpad) f32  fused heads [ll|day|hr|0-pad]
    out_ref,                     # (T*Bt, Wpad) f32  lane-dense fused output
    gx_ref,                      # scratch (T*Bt, 4L) f32  precomputed input-gate projection
    *, seq_len, batch_tile, latent, vocab_sizes,
):
    T, Bt, L = seq_len, batch_tile, latent
    V0, V1, V2 = vocab_sizes

    # ---- feature fusion: ReLU(x @ Wf + bf); fold input projection + bias into
    #      gx once (hoisted out of the recurrence). bf16 MXU, f32 accumulate. ---
    fusion = jnp.maximum(
        jnp.dot(x_ref[...], wf_ref[...], preferred_element_type=jnp.float32)
        + bf_ref[...],
        0.0)                                                       # (T*Bt, L) f32
    gx_ref[...] = (
        jnp.dot(fusion.astype(jnp.bfloat16), wih_ref[...],
                preferred_element_type=jnp.float32)
        + b_ref[...])                                              # (T*Bt, 4L) f32

    # ---- LSTM recurrence (num_layers=1, zero init state) ----------------------
    # T is small and static -> fully unrolled Python loop; h/c and every h_t
    # stay in vregs (h outputs ~8 vregs, bf16 whh 8 vregs), no VMEM round trip.
    # TODO(synk): stage whh in MXU weight registers once via
    # pltpu.matmul_push_rhs / matmul_acc_lhs / matmul_pop so the (L, 4L) weight
    # is not re-streamed every step (split across two mxu_index on v5e's
    # 128-wide MXUs); kept as jnp.dot here for lowering robustness.
    whh = whh_ref[...]                                             # bf16, hoisted once
    h = jnp.zeros((Bt, L), jnp.float32)
    c = jnp.zeros((Bt, L), jnp.float32)
    hs = []
    for t in range(T):
        gates = gx_ref[pl.ds(t * Bt, Bt), :] + jnp.dot(
            h.astype(jnp.bfloat16), whh, preferred_element_type=jnp.float32)
        # gate order (i, f, o, g): one sigmoid over contiguous 3L lanes.
        # (f/g slices start mid-vreg at lane 64/192 -> possible XLU rotates;
        #  left as-is per review, revisit only if they show on the crit chain.)
        sig = jax.nn.sigmoid(gates[:, : 3 * L])
        i = sig[:, 0 * L:1 * L]
        f = sig[:, 1 * L:2 * L]
        o = sig[:, 2 * L:3 * L]
        g = jnp.tanh(gates[:, 3 * L:])
        c = f * c + i * g
        h = o * jnp.tanh(c)
        hs.append(h)
    lstm_out = jnp.concatenate(hs, axis=0)                         # (T*Bt, L), in vregs

    # ---- fused output heads: single lane-dense matmul + single-exp epilogue ---
    logits = jnp.dot(lstm_out.astype(jnp.bfloat16), wheads_ref[...],
                     preferred_element_type=jnp.float32) + bheads_ref[...]

    col = lax.broadcasted_iota(jnp.int32, logits.shape, 1)
    is_ll = col < V0
    is_day = (col >= V0) & (col < V0 + V1)
    is_hr = (col >= V0 + V1) & (col < V0 + V1 + V2)
    is_sm = is_day | is_hr

    # Softmax path stays f32: the -1e30 sentinel would overflow in bf16.
    neg = jnp.float32(-1e30)
    m_day = jnp.max(jnp.where(is_day, logits, neg), axis=-1, keepdims=True)
    m_hr = jnp.max(jnp.where(is_hr, logits, neg), axis=-1, keepdims=True)
    m = jnp.where(is_day, m_day, m_hr)                 # per-lane max (row-broadcast)
    e = jnp.exp(jnp.where(is_sm, logits, neg) - m)     # ONE exp pass; 0 outside softmax lanes
    s_day = jnp.sum(jnp.where(is_day, e, 0.0), axis=-1, keepdims=True)
    s_hr = jnp.sum(jnp.where(is_hr, e, 0.0), axis=-1, keepdims=True)
    # approx reciprocal on EUP: day/hour rows sum to 1 only to ~1e-3 rel error.
    inv = pl.reciprocal(jnp.where(is_day, s_day, s_hr), approx=True)
    sm = e * inv                                       # zero on latlon / padded lanes
    out_ref[...] = jnp.where(is_ll, jnp.tanh(logits), sm)


# -----------------------------------------------------------------------------
# One-time parameter packing (hoisted out of the per-call wrapper)
# -----------------------------------------------------------------------------
def prepack_params(params, vocab_sizes):
    L = params["wf"].shape[1]
    V0, V1, V2 = vocab_sizes
    Vtot = V0 + V1 + V2
    Wpad = ((Vtot + 127) // 128) * 128                 # lane-dense output width

    # PyTorch gate order (i,f,g,o) -> kernel order (i,f,o,g): contiguous sigmoid slab
    def reorder_gates(w):
        i, f, g, o = jnp.split(w, 4, axis=-1)
        return jnp.concatenate([i, f, o, g], axis=-1)

    wheads = jnp.concatenate(
        [params["wll"], params["wday"], params["whr"],
         jnp.zeros((L, Wpad - Vtot), jnp.float32)], axis=-1)
    bheads = jnp.concatenate(
        [params["bll"], params["bday"], params["bhr"],
         jnp.zeros((1, Wpad - Vtot), jnp.float32)], axis=-1)

    return dict(
        wf=params["wf"].astype(jnp.bfloat16),
        bf=params["bf"],
        wih=reorder_gates(params["wih"]).astype(jnp.bfloat16),
        whh=reorder_gates(params["whh"]).astype(jnp.bfloat16),
        b=reorder_gates(params["b"]),
        wheads=wheads.astype(jnp.bfloat16),
        bheads=bheads,
    )


def _pick_batch_tile(B, cap=256):
    # Largest divisor of B that is <= cap (~fills MXU rows per recurrent step
    # before spilling to more grid iterations).
    bt = min(B, cap)
    while B % bt:
        bt -= 1
    return bt


def _vmem_limit_bytes(rows, N, L, Wpad):
    tiles = 2 * rows * (N * 2 + Wpad * 4)              # double-buffered x (bf16) + out (f32)
    scratch = rows * 4 * L * 4                         # gx f32
    weights = (N * L + L * 4 * L * 2 + L * Wpad) * 2 + (L + 4 * L + Wpad) * 4
    # Size from the v7x budget (64 MiB physical), not v5e/v6e's 128 MiB.
    return int(min(max(tiles + scratch + 2 * weights + (2 << 20), 4 << 20), 48 << 20))


# -----------------------------------------------------------------------------
# Wrapper (expects pre-packed params)
# -----------------------------------------------------------------------------
def generator_forward(x, pp, vocab_sizes):
    """x: (batch, time_steps, noise_dim) -> tuple of (batch, time_steps, vocab)."""
    B, T, N = x.shape
    L = pp["bf"].shape[1]
    V0, V1, V2 = vocab_sizes
    Wpad = pp["wheads"].shape[1]

    Bt = _pick_batch_tile(B)
    nb = B // Bt
    rows = T * Bt

    # (B,T,N) -> per batch tile, time-major, flattened: (nb*T*Bt, N), bf16
    x_tiles = jnp.transpose(x.reshape(nb, Bt, T, N), (0, 2, 1, 3))
    x_flat = x_tiles.reshape(nb * rows, N).astype(jnp.bfloat16)

    def full(shape):
        return pl.BlockSpec(shape, lambda i: (0, 0))

    out = pl.pallas_call(
        functools.partial(generator_kernel, seq_len=T, batch_tile=Bt, latent=L,
                          vocab_sizes=(V0, V1, V2)),
        out_shape=jax.ShapeDtypeStruct((nb * rows, Wpad), jnp.float32),
        grid_spec=pltpu.PrefetchScalarGridSpec(
            num_scalar_prefetch=0,
            grid=(nb,),                                   # batch tiles are independent
            in_specs=[
                pl.BlockSpec((rows, N), lambda i: (i, 0)),      # x tile
                full((N, L)), full((1, L)),                     # feature fusion
                full((L, 4 * L)), full((L, 4 * L)), full((1, 4 * L)),  # LSTM
                full((L, Wpad)), full((1, Wpad)),               # fused heads
            ],
            out_specs=pl.BlockSpec((rows, Wpad), lambda i: (i, 0)),
            scratch_shapes=[pltpu.VMEM((rows, 4 * L), jnp.float32)],   # gx
        ),
        compiler_params=pltpu.CompilerParams(
            dimension_semantics=("parallel",),
            vmem_limit_bytes=_vmem_limit_bytes(rows, N, L, Wpad)),
    )(x_flat, pp["wf"], pp["bf"], pp["wih"], pp["whh"], pp["b"],
      pp["wheads"], pp["bheads"])

    # back to (batch, time_steps, feature_size) like the PyTorch module
    out_btw = jnp.transpose(out.reshape(nb, T, Bt, Wpad), (0, 2, 1, 3)).reshape(B, T, Wpad)
    results, off = [], 0
    for V in (V0, V1, V2):
        results.append(out_btw[:, :, off:off + V])
        off += V
    return tuple(results)


# -----------------------------------------------------------------------------
# Deterministic parameter init (shapes from Generator.__init__, PyTorch layout)
# -----------------------------------------------------------------------------
def init_params(key, noise_dim, latent_dim, vocab_sizes):
    def lin(k, fan_in, fan_out):
        bound = 1.0 / math.sqrt(fan_in)
        kw, kb = jax.random.split(k)
        w = jax.random.uniform(kw, (fan_in, fan_out), jnp.float32, -bound, bound)
        b = jax.random.uniform(kb, (1, fan_out), jnp.float32, -bound, bound)
        return w, b

    V0, V1, V2 = vocab_sizes
    keys = jax.random.split(key, 6)
    wf, bf = lin(keys[0], noise_dim, latent_dim)
    wih, bih = lin(keys[1], latent_dim, 4 * latent_dim)   # PyTorch gate order: i, f, g, o
    whh, bhh = lin(keys[2], latent_dim, 4 * latent_dim)
    wll, bll = lin(keys[3], latent_dim, V0)
    wday, bday = lin(keys[4], latent_dim, V1)
    whr, bhr = lin(keys[5], latent_dim, V2)
    return dict(wf=wf, bf=bf, wih=wih, whh=whh, b=bih + bhh,
                wll=wll, bll=bll, wday=wday, bday=bday, whr=whr, bhr=bhr)


# -----------------------------------------------------------------------------
# Pure-JAX reference (PyTorch semantics, for correctness check)
# -----------------------------------------------------------------------------
def reference_forward(x, p):
    B, T, N = x.shape
    L = p["wf"].shape[1]
    fusion = jax.nn.relu(jnp.einsum("btn,nl->btl", x, p["wf"]) + p["bf"][0])

    def step(carry, xt):
        h, c = carry
        gates = xt @ p["wih"] + h @ p["whh"] + p["b"][0]
        i = jax.nn.sigmoid(gates[:, :L])
        f = jax.nn.sigmoid(gates[:, L:2 * L])
        g = jnp.tanh(gates[:, 2 * L:3 * L])
        o = jax.nn.sigmoid(gates[:, 3 * L:])
        c = f * c + i * g
        h = o * jnp.tanh(c)
        return (h, c), h

    h0 = jnp.zeros((B, L), jnp.float32)
    c0 = jnp.zeros((B, L), jnp.float32)
    _, hs = lax.scan(step, (h0, c0), jnp.transpose(fusion, (1, 0, 2)))
    lstm_out = jnp.transpose(hs, (1, 0, 2))                      # (B, T, L)

    ll = jnp.tanh(lstm_out @ p["wll"] + p["bll"][0])
    day = jax.nn.softmax(lstm_out @ p["wday"] + p["bday"][0], axis=-1)
    hr = jax.nn.softmax(lstm_out @ p["whr"] + p["bhr"][0], axis=-1)
    return ll, day, hr


if __name__ == "__main__":
    # Module config (recurrent_layers=1, dp=False)
    # TODO(synk): recurrent_layers > 1 (stacked LSTM) and dp=True (Opacus DPLSTM)
    # are not implemented; module defaults are covered.
    features = ["latlon", "day", "hour"]
    vocab_size = {"latlon": 2, "day": 7, "hour": 24}
    noise_dim = 32
    latent_dim = 64
    batch, time_steps = 8, 8
    vocab_sizes = tuple(vocab_size[f] for f in features)

    key = jax.random.PRNGKey(0)
    k_x, k_p = jax.random.split(key)
    x = jax.random.normal(k_x, (batch, time_steps, noise_dim), jnp.float32)
    params = init_params(k_p, noise_dim, latent_dim, vocab_sizes)

    packed = prepack_params(params, vocab_sizes)     # one-time packing, not per call
    fwd = jax.jit(functools.partial(generator_forward, vocab_sizes=vocab_sizes))

    outs = fwd(x, packed)
    outs = jax.block_until_ready(outs)

    refs = reference_forward(x, params)
    for o, r, f in zip(outs, refs, features):
        assert o.shape == r.shape == (batch, time_steps, vocab_size[f]), (o.shape, r.shape)
        assert bool(jnp.all(jnp.isfinite(o)))
        assert bool(jnp.allclose(o, r, atol=2e-2, rtol=2e-2)), f"mismatch on {f}"

    print("KERNEL_OK")
</pallas_src>

<mosaic_0001>
module attributes {stable_mosaic.version = 11 : i64} {
  func.func @generator_kernel(%arg0: i32, %arg1: memref<64x32xbf16, #tpu.memory_space<vmem>>, %arg2: memref<32x64xbf16, #tpu.memory_space<vmem>>, %arg3: memref<1x64xf32, #tpu.memory_space<vmem>>, %arg4: memref<64x256xbf16, #tpu.memory_space<vmem>>, %arg5: memref<64x256xbf16, #tpu.memory_space<vmem>>, %arg6: memref<1x256xf32, #tpu.memory_space<vmem>>, %arg7: memref<64x128xbf16, #tpu.memory_space<vmem>>, %arg8: memref<1x128xf32, #tpu.memory_space<vmem>>, %arg9: memref<64x128xf32, #tpu.memory_space<vmem>>, %arg10: memref<64x256xf32, #tpu.memory_space<vmem>>) attributes {dimension_semantics = [#tpu.dimension_semantics<parallel>], iteration_bounds = array<i64: 1>, scalar_prefetch = 0 : i64, scratch_operands = 1 : i64, tpu.core_type = #tpu.core_type<tc>, window_params = [{transform_indices = @transform_0, window_bounds = array<i64: 64, 32>}, {pipeline_mode = #tpu.pipeline_mode<synchronous>, transform_indices = @transform_1, window_bounds = array<i64: 32, 64>}, {pipeline_mode = #tpu.pipeline_mode<synchronous>, transform_indices = @transform_2, window_bounds = array<i64: 1, 64>}, {pipeline_mode = #tpu.pipeline_mode<synchronous>, transform_indices = @transform_3, window_bounds = array<i64: 64, 256>}, {pipeline_mode = #tpu.pipeline_mode<synchronous>, transform_indices = @transform_4, window_bounds = array<i64: 64, 256>}, {pipeline_mode = #tpu.pipeline_mode<synchronous>, transform_indices = @transform_5, window_bounds = array<i64: 1, 256>}, {pipeline_mode = #tpu.pipeline_mode<synchronous>, transform_indices = @transform_6, window_bounds = array<i64: 64, 128>}, {pipeline_mode = #tpu.pipeline_mode<synchronous>, transform_indices = @transform_7, window_bounds = array<i64: 1, 128>}, {transform_indices = @transform_8, window_bounds = array<i64: 64, 128>}]} {
    %c0 = arith.constant 0 : index
    %c0_0 = arith.constant 0 : index
    %0 = vector.load %arg1[%c0, %c0_0] : memref<64x32xbf16, #tpu.memory_space<vmem>>, vector<64x32xbf16>
    %c0_1 = arith.constant 0 : index
    %c0_2 = arith.constant 0 : index
    %1 = vector.load %arg2[%c0_1, %c0_2] : memref<32x64xbf16, #tpu.memory_space<vmem>>, vector<32x64xbf16>
    %cst = arith.constant dense<0.000000e+00> : vector<64x64xf32>
    %2 = tpu.matmul %0, %1, %cst {dimension_numbers = #tpu.dot_dimension_numbers<[1], [0], [0], [1], [0, 0, 1, 1], [], []>} : vector<64x32xbf16>, vector<32x64xbf16>, vector<64x64xf32> -> vector<64x64xf32>
    %c0_3 = arith.constant 0 : index
    %c0_4 = arith.constant 0 : index
    %3 = vector.load %arg3[%c0_3, %c0_4] : memref<1x64xf32, #tpu.memory_space<vmem>>, vector<1x64xf32>
    %4 = vector.broadcast %3 : vector<1x64xf32> to vector<64x64xf32>
    %5 = arith.addf %2, %4 : vector<64x64xf32>
    %cst_5 = arith.constant 0.000000e+00 : f32
    %6 = vector.broadcast %cst_5 : f32 to vector<64x64xf32>
    %7 = arith.maximumf %5, %6 : vector<64x64xf32>
    %8 = arith.truncf %7 : vector<64x64xf32> to vector<64x64xbf16>
    %c0_6 = arith.constant 0 : index
    %c0_7 = arith.constant 0 : index
    %9 = vector.load %arg4[%c0_6, %c0_7] : memref<64x256xbf16, #tpu.memory_space<vmem>>, vector<64x256xbf16>
    %cst_8 = arith.constant dense<0.000000e+00> : vector<64x256xf32>
    %10 = tpu.matmul %8, %9, %cst_8 {dimension_numbers = #tpu.dot_dimension_numbers<[1], [0], [0], [1], [0, 0, 1, 1], [], []>} : vector<64x64xbf16>, vector<64x256xbf16>, vector<64x256xf32> -> vector<64x256xf32>
    %c0_9 = arith.constant 0 : index
    %c0_10 = arith.constant 0 : index
    %11 = vector.load %arg6[%c0_9, %c0_10] : memref<1x256xf32, #tpu.memory_space<vmem>>, vector<1x256xf32>
    %12 = vector.broadcast %11 : vector<1x256xf32> to vector<64x256xf32>
    %13 = arith.addf %10, %12 : vector<64x256xf32>
    %c0_11 = arith.constant 0 : index
    %c0_12 = arith.constant 0 : index
    %14 = vector.load %arg10[%c0_11, %c0_12] : memref<64x256xf32, #tpu.memory_space<vmem>>, vector<64x256xf32>
    tpu.vector_store %arg10[%c0_11, %c0_12], %13 {strides = array<i32>} : memref<64x256xf32, #tpu.memory_space<vmem>>, vector<64x256xf32>,
    %c0_13 = arith.constant 0 : index
    %c0_14 = arith.constant 0 : index
    %15 = vector.load %arg5[%c0_13, %c0_14] : memref<64x256xbf16, #tpu.memory_space<vmem>>, vector<64x256xbf16>
    %cst_15 = arith.constant 0.000000e+00 : f32
    %16 = vector.broadcast %cst_15 : f32 to vector<8x64xf32>
    %cst_16 = arith.constant 0.000000e+00 : f32
    %17 = vector.broadcast %cst_16 : f32 to vector<8x64xf32>
    %c0_17 = arith.constant 0 : index
    %c0_18 = arith.constant 0 : index
    %18 = vector.load %arg10[%c0_17, %c0_18] : memref<64x256xf32, #tpu.memory_space<vmem>>, vector<8x256xf32>
    %19 = arith.truncf %16 : vector<8x64xf32> to vector<8x64xbf16>
    %cst_19 = arith.constant dense<0.000000e+00> : vector<8x256xf32>
    %20 = tpu.matmul %19, %15, %cst_19 {dimension_numbers = #tpu.dot_dimension_numbers<[1], [0], [0], [1], [0, 0, 1, 1], [], []>} : vector<8x64xbf16>, vector<64x256xbf16>, vector<8x256xf32> -> vector<8x256xf32>
    %21 = arith.addf %18, %20 : vector<8x256xf32>
    %22 = vector.extract_strided_slice %21 {offsets = [0, 0], sizes = [8, 192], strides = [1, 1]} : vector<8x256xf32> to vector<8x192xf32>
    %23 = arith.negf %22 : vector<8x192xf32>
    %24 = math.exp %23 : vector<8x192xf32>
    %cst_20 = arith.constant 1.000000e+00 : f32
    %25 = vector.broadcast %cst_20 : f32 to vector<8x192xf32>
    %26 = arith.addf %25, %24 : vector<8x192xf32>
    %27 = arith.divf %25, %26 : vector<8x192xf32>
    %28 = vector.extract_strided_slice %27 {offsets = [0, 0], sizes = [8, 64], strides = [1, 1]} : vector<8x192xf32> to vector<8x64xf32>
    %29 = vector.extract_strided_slice %27 {offsets = [0, 64], sizes = [8, 64], strides = [1, 1]} : vector<8x192xf32> to vector<8x64xf32>
    %30 = vector.extract_strided_slice %27 {offsets = [0, 128], sizes = [8, 64], strides = [1, 1]} : vector<8x192xf32> to vector<8x64xf32>
    %31 = vector.extract_strided_slice %21 {offsets = [0, 192], sizes = [8, 64], strides = [1, 1]} : vector<8x256xf32> to vector<8x64xf32>
    %32 = math.tanh %31 : vector<8x64xf32>
    %33 = arith.mulf %29, %17 : vector<8x64xf32>
    %34 = arith.mulf %28, %32 : vector<8x64xf32>
    %35 = arith.addf %33, %34 : vector<8x64xf32>
    %36 = math.tanh %35 : vector<8x64xf32>
    %37 = arith.mulf %30, %36 : vector<8x64xf32>
    %c8 = arith.constant 8 : index
    %c0_21 = arith.constant 0 : index
    %38 = vector.load %arg10[%c8, %c0_21] : memref<64x256xf32, #tpu.memory_space<vmem>>, vector<8x256xf32>
    %39 = arith.truncf %37 : vector<8x64xf32> to vector<8x64xbf16>
    %cst_22 = arith.constant dense<0.000000e+00> : vector<8x256xf32>
    %40 = tpu.matmul %39, %15, %cst_22 {dimension_numbers = #tpu.dot_dimension_numbers<[1], [0], [0], [1], [0, 0, 1, 1], [], []>} : vector<8x64xbf16>, vector<64x256xbf16>, vector<8x256xf32> -> vector<8x256xf32>
    %41 = arith.addf %38, %40 : vector<8x256xf32>
    %42 = vector.extract_strided_slice %41 {offsets = [0, 0], sizes = [8, 192], strides = [1, 1]} : vector<8x256xf32> to vector<8x192xf32>
    %43 = arith.negf %42 : vector<8x192xf32>
    %44 = math.exp %43 : vector<8x192xf32>
    %cst_23 = arith.constant 1.000000e+00 : f32
    %45 = vector.broadcast %cst_23 : f32 to vector<8x192xf32>
    %46 = arith.addf %45, %44 : vector<8x192xf32>
    %47 = arith.divf %45, %46 : vector<8x192xf32>
    %48 = vector.extract_strided_slice %47 {offsets = [0, 0], sizes = [8, 64], strides = [1, 1]} : vector<8x192xf32> to vector<8x64xf32>
    %49 = vector.extract_strided_slice %47 {offsets = [0, 64], sizes = [8, 64], strides = [1, 1]} : vector<8x192xf32> to vector<8x64xf32>
    %50 = vector.extract_strided_slice %47 {offsets = [0, 128], sizes = [8, 64], strides = [1, 1]} : vector<8x192xf32> to vector<8x64xf32>
    %51 = vector.extract_strided_slice %41 {offsets = [0, 192], sizes = [8, 64], strides = [1, 1]} : vector<8x256xf32> to vector<8x64xf32>
    %52 = math.tanh %51 : vector<8x64xf32>
    %53 = arith.mulf %49, %35 : vector<8x64xf32>
    %54 = arith.mulf %48, %52 : vector<8x64xf32>
    %55 = arith.addf %53, %54 : vector<8x64xf32>
    %56 = math.tanh %55 : vector<8x64xf32>
    %57 = arith.mulf %50, %56 : vector<8x64xf32>
    %c16 = arith.constant 16 : index
    %c0_24 = arith.constant 0 : index
    %58 = vector.load %arg10[%c16, %c0_24] : memref<64x256xf32, #tpu.memory_space<vmem>>, vector<8x256xf32>
    %59 = arith.truncf %57 : vector<8x64xf32> to vector<8x64xbf16>
    %cst_25 = arith.constant dense<0.000000e+00> : vector<8x256xf32>
    %60 = tpu.matmul %59, %15, %cst_25 {dimension_numbers = #tpu.dot_dimension_numbers<[1], [0], [0], [1], [0, 0, 1, 1], [], []>} : vector<8x64xbf16>, vector<64x256xbf16>, vector<8x256xf32> -> vector<8x256xf32>
    %61 = arith.addf %58, %60 : vector<8x256xf32>
    %62 = vector.extract_strided_slice %61 {offsets = [0, 0], sizes = [8, 192], strides = [1, 1]} : vector<8x256xf32> to vector<8x192xf32>
    %63 = arith.negf %62 : vector<8x192xf32>
    %64 = math.exp %63 : vector<8x192xf32>
    %cst_26 = arith.constant 1.000000e+00 : f32
    %65 = vector.broadcast %cst_26 : f32 to vector<8x192xf32>
    %66 = arith.addf %65, %64 : vector<8x192xf32>
    %67 = arith.divf %65, %66 : vector<8x192xf32>
    %68 = vector.extract_strided_slice %67 {offsets = [0, 0], sizes = [8, 64], strides = [1, 1]} : vector<8x192xf32> to vector<8x64xf32>
    %69 = vector.extract_strided_slice %67 {offsets = [0, 64], sizes = [8, 64], strides = [1, 1]} : vector<8x192xf32> to vector<8x64xf32>
    %70 = vector.extract_strided_slice %67 {offsets = [0, 128], sizes = [8, 64], strides = [1, 1]} : vector<8x192xf32> to vector<8x64xf32>
    %71 = vector.extract_strided_slice %61 {offsets = [0, 192], sizes = [8, 64], strides = [1, 1]} : vector<8x256xf32> to vector<8x64xf32>
    %72 = math.tanh %71 : vector<8x64xf32>
    %73 = arith.mulf %69, %55 : vector<8x64xf32>
    %74 = arith.mulf %68, %72 : vector<8x64xf32>
    %75 = arith.addf %73, %74 : vector<8x64xf32>
    %76 = math.tanh %75 : vector<8x64xf32>
    %77 = arith.mulf %70, %76 : vector<8x64xf32>
    %c24 = arith.constant 24 : index
    %c0_27 = arith.constant 0 : index
    %78 = vector.load %arg10[%c24, %c0_27] : memref<64x256xf32, #tpu.memory_space<vmem>>, vector<8x256xf32>
    %79 = arith.truncf %77 : vector<8x64xf32> to vector<8x64xbf16>
    %cst_28 = arith.constant dense<0.000000e+00> : vector<8x256xf32>
    %80 = tpu.matmul %79, %15, %cst_28 {dimension_numbers = #tpu.dot_dimension_numbers<[1], [0], [0], [1], [0, 0, 1, 1], [], []>} : vector<8x64xbf16>, vector<64x256xbf16>, vector<8x256xf32> -> vector<8x256xf32>
    %81 = arith.addf %78, %80 : vector<8x256xf32>
    %82 = vector.extract_strided_slice %81 {offsets = [0, 0], sizes = [8, 192], strides = [1, 1]} : vector<8x256xf32> to vector<8x192xf32>
    %83 = arith.negf %82 : vector<8x192xf32>
    %84 = math.exp %83 : vector<8x192xf32>
    %cst_29 = arith.constant 1.000000e+00 : f32
    %85 = vector.broadcast %cst_29 : f32 to vector<8x192xf32>
    %86 = arith.addf %85, %84 : vector<8x192xf32>
    %87 = arith.divf %85, %86 : vector<8x192xf32>
    %88 = vector.extract_strided_slice %87 {offsets = [0, 0], sizes = [8, 64], strides = [1, 1]} : vector<8x192xf32> to vector<8x64xf32>
    %89 = vector.extract_strided_slice %87 {offsets = [0, 64], sizes = [8, 64], strides = [1, 1]} : vector<8x192xf32> to vector<8x64xf32>
    %90 = vector.extract_strided_slice %87 {offsets = [0, 128], sizes = [8, 64], strides = [1, 1]} : vector<8x192xf32> to vector<8x64xf32>
    %91 = vector.extract_strided_slice %81 {offsets = [0, 192], sizes = [8, 64], strides = [1, 1]} : vector<8x256xf32> to vector<8x64xf32>
    %92 = math.tanh %91 : vector<8x64xf32>
    %93 = arith.mulf %89, %75 : vector<8x64xf32>
    %94 = arith.mulf %88, %92 : vector<8x64xf32>
    %95 = arith.addf %93, %94 : vector<8x64xf32>
    %96 = math.tanh %95 : vector<8x64xf32>
    %97 = arith.mulf %90, %96 : vector<8x64xf32>
    %c32 = arith.constant 32 : index
    %c0_30 = arith.constant 0 : index
    %98 = vector.load %arg10[%c32, %c0_30] : memref<64x256xf32, #tpu.memory_space<vmem>>, vector<8x256xf32>
    %99 = arith.truncf %97 : vector<8x64xf32> to vector<8x64xbf16>
    %cst_31 = arith.constant dense<0.000000e+00> : vector<8x256xf32>
    %100 = tpu.matmul %99, %15, %cst_31 {dimension_numbers = #tpu.dot_dimension_numbers<[1], [0], [0], [1], [0, 0, 1, 1], [], []>} : vector<8x64xbf16>, vector<64x256xbf16>, vector<8x256xf32> -> vector<8x256xf32>
    %101 = arith.addf %98, %100 : vector<8x256xf32>
    %102 = vector.extract_strided_slice %101 {offsets = [0, 0], sizes = [8, 192], strides = [1, 1]} : vector<8x256xf32> to vector<8x192xf32>
    %103 = arith.negf %102 : vector<8x192xf32>
    %104 = math.exp %103 : vector<8x192xf32>
    %cst_32 = arith.constant 1.000000e+00 : f32
    %105 = vector.broadcast %cst_32 : f32 to vector<8x192xf32>
    %106 = arith.addf %105, %104 : vector<8x192xf32>
    %107 = arith.divf %105, %106 : vector<8x192xf32>
    %108 = vector.extract_strided_slice %107 {offsets = [0, 0], sizes = [8, 64], strides = [1, 1]} : vector<8x192xf32> to vector<8x64xf32>
    %109 = vector.extract_strided_slice %107 {offsets = [0, 64], sizes = [8, 64], strides = [1, 1]} : vector<8x192xf32> to vector<8x64xf32>
    %110 = vector.extract_strided_slice %107 {offsets = [0, 128], sizes = [8, 64], strides = [1, 1]} : vector<8x192xf32> to vector<8x64xf32>
    %111 = vector.extract_strided_slice %101 {offsets = [0, 192], sizes = [8, 64], strides = [1, 1]} : vector<8x256xf32> to vector<8x64xf32>
    %112 = math.tanh %111 : vector<8x64xf32>
    %113 = arith.mulf %109, %95 : vector<8x64xf32>
    %114 = arith.mulf %108, %112 : vector<8x64xf32>
    %115 = arith.addf %113, %114 : vector<8x64xf32>
    %116 = math.tanh %115 : vector<8x64xf32>
    %117 = arith.mulf %110, %116 : vector<8x64xf32>
    %c40 = arith.constant 40 : index
    %c0_33 = arith.constant 0 : index
    %118 = vector.load %arg10[%c40, %c0_33] : memref<64x256xf32, #tpu.memory_space<vmem>>, vector<8x256xf32>
    %119 = arith.truncf %117 : vector<8x64xf32> to vector<8x64xbf16>
    %cst_34 = arith.constant dense<0.000000e+00> : vector<8x256xf32>
    %120 = tpu.matmul %119, %15, %cst_34 {dimension_numbers = #tpu.dot_dimension_numbers<[1], [0], [0], [1], [0, 0, 1, 1], [], []>} : vector<8x64xbf16>, vector<64x256xbf16>, vector<8x256xf32> -> vector<8x256xf32>
    %121 = arith.addf %118, %120 : vector<8x256xf32>
    %122 = vector.extract_strided_slice %121 {offsets = [0, 0], sizes = [8, 192], strides = [1, 1]} : vector<8x256xf32> to vector<8x192xf32>
    %123 = arith.negf %122 : vector<8x192xf32>
    %124 = math.exp %123 : vector<8x192xf32>
    %cst_35 = arith.constant 1.000000e+00 : f32
    %125 = vector.broadcast %cst_35 : f32 to vector<8x192xf32>
    %126 = arith.addf %125, %124 : vector<8x192xf32>
    %127 = arith.divf %125, %126 : vector<8x192xf32>
    %128 = vector.extract_strided_slice %127 {offsets = [0, 0], sizes = [8, 64], strides = [1, 1]} : vector<8x192xf32> to vector<8x64xf32>
    %129 = vector.extract_strided_slice %127 {offsets = [0, 64], sizes = [8, 64], strides = [1, 1]} : vector<8x192xf32> to vector<8x64xf32>
    %130 = vector.extract_strided_slice %127 {offsets = [0, 128], sizes = [8, 64], strides = [1, 1]} : vector<8x192xf32> to vector<8x64xf32>
    %131 = vector.extract_strided_slice %121 {offsets = [0, 192], sizes = [8, 64], strides = [1, 1]} : vector<8x256xf32> to vector<8x64xf32>
    %132 = math.tanh %131 : vector<8x64xf32>
    %133 = arith.mulf %129, %115 : vector<8x64xf32>
    %134 = arith.mulf %128, %132 : vector<8x64xf32>
    %135 = arith.addf %133, %134 : vector<8x64xf32>
    %136 = math.tanh %135 : vector<8x64xf32>
    %137 = arith.mulf %130, %136 : vector<8x64xf32>
    %c48 = arith.constant 48 : index
    %c0_36 = arith.constant 0 : index
    %138 = vector.load %arg10[%c48, %c0_36] : memref<64x256xf32, #tpu.memory_space<vmem>>, vector<8x256xf32>
    %139 = arith.truncf %137 : vector<8x64xf32> to vector<8x64xbf16>
    %cst_37 = arith.constant dense<0.000000e+00> : vector<8x256xf32>
    %140 = tpu.matmul %139, %15, %cst_37 {dimension_numbers = #tpu.dot_dimension_numbers<[1], [0], [0], [1], [0, 0, 1, 1], [], []>} : vector<8x64xbf16>, vector<64x256xbf16>, vector<8x256xf32> -> vector<8x256xf32>
    %141 = arith.addf %138, %140 : vector<8x256xf32>
    %142 = vector.extract_strided_slice %141 {offsets = [0, 0], sizes = [8, 192], strides = [1, 1]} : vector<8x256xf32> to vector<8x192xf32>
    %143 = arith.negf %142 : vector<8x192xf32>
    %144 = math.exp %143 : vector<8x192xf32>
    %cst_38 = arith.constant 1.000000e+00 : f32
    %145 = vector.broadcast %cst_38 : f32 to vector<8x192xf32>
    %146 = arith.addf %145, %144 : vector<8x192xf32>
    %147 = arith.divf %145, %146 : vector<8x192xf32>
    %148 = vector.extract_strided_slice %147 {offsets = [0, 0], sizes = [8, 64], strides = [1, 1]} : vector<8x192xf32> to vector<8x64xf32>
    %149 = vector.extract_strided_slice %147 {offsets = [0, 64], sizes = [8, 64], strides = [1, 1]} : vector<8x192xf32> to vector<8x64xf32>
    %150 = vector.extract_strided_slice %147 {offsets = [0, 128], sizes = [8, 64], strides = [1, 1]} : vector<8x192xf32> to vector<8x64xf32>
    %151 = vector.extract_strided_slice %141 {offsets = [0, 192], sizes = [8, 64], strides = [1, 1]} : vector<8x256xf32> to vector<8x64xf32>
    %152 = math.tanh %151 : vector<8x64xf32>
    %153 = arith.mulf %149, %135 : vector<8x64xf32>
    %154 = arith.mulf %148, %152 : vector<8x64xf32>
    %155 = arith.addf %153, %154 : vector<8x64xf32>
    %156 = math.tanh %155 : vector<8x64xf32>
    %157 = arith.mulf %150, %156 : vector<8x64xf32>
    %c56 = arith.constant 56 : index
    %c0_39 = arith.constant 0 : index
    %158 = vector.load %arg10[%c56, %c0_39] : memref<64x256xf32, #tpu.memory_space<vmem>>, vector<8x256xf32>
    %159 = arith.truncf %157 : vector<8x64xf32> to vector<8x64xbf16>
    %cst_40 = arith.constant dense<0.000000e+00> : vector<8x256xf32>
    %160 = tpu.matmul %159, %15, %cst_40 {dimension_numbers = #tpu.dot_dimension_numbers<[1], [0], [0], [1], [0, 0, 1, 1], [], []>} : vector<8x64xbf16>, vector<64x256xbf16>, vector<8x256xf32> -> vector<8x256xf32>
    %161 = arith.addf %158, %160 : vector<8x256xf32>
    %162 = vector.extract_strided_slice %161 {offsets = [0, 0], sizes = [8, 192], strides = [1, 1]} : vector<8x256xf32> to vector<8x192xf32>
    %163 = arith.negf %162 : vector<8x192xf32>
    %164 = math.exp %163 : vector<8x192xf32>
    %cst_41 = arith.constant 1.000000e+00 : f32
    %165 = vector.broadcast %cst_41 : f32 to vector<8x192xf32>
    %166 = arith.addf %165, %164 : vector<8x192xf32>
    %167 = arith.divf %165, %166 : vector<8x192xf32>
    %168 = vector.extract_strided_slice %167 {offsets = [0, 0], sizes = [8, 64], strides = [1, 1]} : vector<8x192xf32> to vector<8x64xf32>
    %169 = vector.extract_strided_slice %167 {offsets = [0, 64], sizes = [8, 64], strides = [1, 1]} : vector<8x192xf32> to vector<8x64xf32>
    %170 = vector.extract_strided_slice %167 {offsets = [0, 128], sizes = [8, 64], strides = [1, 1]} : vector<8x192xf32> to vector<8x64xf32>
    %171 = vector.extract_strided_slice %161 {offsets = [0, 192], sizes = [8, 64], strides = [1, 1]} : vector<8x256xf32> to vector<8x64xf32>
    %172 = math.tanh %171 : vector<8x64xf32>
    %173 = arith.mulf %169, %155 : vector<8x64xf32>
    %174 = arith.mulf %168, %172 : vector<8x64xf32>
    %175 = arith.addf %173, %174 : vector<8x64xf32>
    %176 = math.tanh %175 : vector<8x64xf32>
    %177 = arith.mulf %170, %176 : vector<8x64xf32>
    %178 = tpu.concatenate %37, %57, %77, %97, %117, %137, %157, %177 in 0 : vector<8x64xf32>, vector<8x64xf32>, vector<8x64xf32>, vector<8x64xf32>, vector<8x64xf32>, vector<8x64xf32>, vector<8x64xf32>, vector<8x64xf32> -> vector<64x64xf32>
    %179 = arith.truncf %178 : vector<64x64xf32> to vector<64x64xbf16>
    %c0_42 = arith.constant 0 : index
    %c0_43 = arith.constant 0 : index
    %180 = vector.load %arg7[%c0_42, %c0_43] : memref<64x128xbf16, #tpu.memory_space<vmem>>, vector<64x128xbf16>
    %cst_44 = arith.constant dense<0.000000e+00> : vector<64x128xf32>
    %181 = tpu.matmul %179, %180, %cst_44 {dimension_numbers = #tpu.dot_dimension_numbers<[1], [0], [0], [1], [0, 0, 1, 1], [], []>} : vector<64x64xbf16>, vector<64x128xbf16>, vector<64x128xf32> -> vector<64x128xf32>
    %c0_45 = arith.constant 0 : index
    %c0_46 = arith.constant 0 : index
    %182 = vector.load %arg8[%c0_45, %c0_46] : memref<1x128xf32, #tpu.memory_space<vmem>>, vector<1x128xf32>
    %183 = vector.broadcast %182 : vector<1x128xf32> to vector<64x128xf32>
    %184 = arith.addf %181, %183 : vector<64x128xf32>
    %185 = tpu.iota {dimensions = array<i32: 1>} : vector<64x128xi32>
    %c2_i32 = arith.constant 2 : i32
    %186 = vector.broadcast %c2_i32 : i32 to vector<64x128xi32>
    %187 = arith.cmpi slt, %185, %186 : vector<64x128xi32>
    %c2_i32_47 = arith.constant 2 : i32
    %188 = vector.broadcast %c2_i32_47 : i32 to vector<64x128xi32>
    %189 = arith.cmpi sge, %185, %188 : vector<64x128xi32>
    %c9_i32 = arith.constant 9 : i32
    %190 = vector.broadcast %c9_i32 : i32 to vector<64x128xi32>
    %191 = arith.cmpi slt, %185, %190 : vector<64x128xi32>
    %192 = arith.andi %189, %191 : vector<64x128xi1>
    %c9_i32_48 = arith.constant 9 : i32
    %193 = vector.broadcast %c9_i32_48 : i32 to vector<64x128xi32>
    %194 = arith.cmpi sge, %185, %193 : vector<64x128xi32>
    %c33_i32 = arith.constant 33 : i32
    %195 = vector.broadcast %c33_i32 : i32 to vector<64x128xi32>
    %196 = arith.cmpi slt, %185, %195 : vector<64x128xi32>
    %197 = arith.andi %194, %196 : vector<64x128xi1>
    %198 = arith.ori %192, %197 : vector<64x128xi1>
    %cst_49 = arith.constant -1.000000e+30 : f32
    %199 = vector.broadcast %cst_49 : f32 to vector<64x128xf32>
    %200 = arith.select %192, %184, %199 : vector<64x128xi1>, vector<64x128xf32>
    %cst_50 = arith.constant dense<0xFF800000> : vector<64xf32>
    %201 = vector.multi_reduction <maximumf>, %200, %cst_50 [1] : vector<64x128xf32> to vector<64xf32>
    %202 = vector.shape_cast %201 : vector<64xf32> to vector<64x1xf32>
    %cst_51 = arith.constant -1.000000e+30 : f32
    %203 = vector.broadcast %cst_51 : f32 to vector<64x128xf32>
    %204 = arith.select %197, %184, %203 : vector<64x128xi1>, vector<64x128xf32>
    %cst_52 = arith.constant dense<0xFF800000> : vector<64xf32>
    %205 = vector.multi_reduction <maximumf>, %204, %cst_52 [1] : vector<64x128xf32> to vector<64xf32>
    %206 = vector.shape_cast %205 : vector<64xf32> to vector<64x1xf32>
    %207 = vector.shape_cast %202 : vector<64x1xf32> to vector<64x1xf32>
    %208 = vector.broadcast %207 : vector<64x1xf32> to vector<64x128xf32>
    %209 = vector.shape_cast %206 : vector<64x1xf32> to vector<64x1xf32>
    %210 = vector.broadcast %209 : vector<64x1xf32> to vector<64x128xf32>
    %211 = arith.select %192, %208, %210 : vector<64x128xi1>, vector<64x128xf32>
    %cst_53 = arith.constant -1.000000e+30 : f32
    %212 = vector.broadcast %cst_53 : f32 to vector<64x128xf32>
    %213 = arith.select %198, %184, %212 : vector<64x128xi1>, vector<64x128xf32>
    %214 = arith.subf %213, %211 : vector<64x128xf32>
    %215 = math.exp %214 : vector<64x128xf32>
    %cst_54 = arith.constant 0.000000e+00 : f32
    %216 = vector.broadcast %cst_54 : f32 to vector<64x128xf32>
    %217 = arith.select %192, %215, %216 : vector<64x128xi1>, vector<64x128xf32>
    %cst_55 = arith.constant dense<0.000000e+00> : vector<64xf32>
    %218 = vector.multi_reduction <add>, %217, %cst_55 [1] : vector<64x128xf32> to vector<64xf32>
    %219 = vector.shape_cast %218 : vector<64xf32> to vector<64x1xf32>
    %cst_56 = arith.constant 0.000000e+00 : f32
    %220 = vector.broadcast %cst_56 : f32 to vector<64x128xf32>
    %221 = arith.select %197, %215, %220 : vector<64x128xi1>, vector<64x128xf32>
    %cst_57 = arith.constant dense<0.000000e+00> : vector<64xf32>
    %222 = vector.multi_reduction <add>, %221, %cst_57 [1] : vector<64x128xf32> to vector<64xf32>
    %223 = vector.shape_cast %222 : vector<64xf32> to vector<64x1xf32>
    %224 = vector.shape_cast %219 : vector<64x1xf32> to vector<64x1xf32>
    %225 = vector.broadcast %224 : vector<64x1xf32> to vector<64x128xf32>
    %226 = vector.shape_cast %223 : vector<64x1xf32> to vector<64x1xf32>
    %227 = vector.broadcast %226 : vector<64x1xf32> to vector<64x128xf32>
    %228 = arith.select %192, %225, %227 : vector<64x128xi1>, vector<64x128xf32>
    %229 = tpu.reciprocal %228 {approx = true} : vector<64x128xf32> -> vector<64x128xf32>
    %230 = arith.mulf %215, %229 : vector<64x128xf32>
    %231 = math.tanh %184 : vector<64x128xf32>
    %232 = arith.select %187, %231, %230 : vector<64x128xi1>, vector<64x128xf32>
    %c0_58 = arith.constant 0 : index
    %c0_59 = arith.constant 0 : index
    %233 = vector.load %arg9[%c0_58, %c0_59] : memref<64x128xf32, #tpu.memory_space<vmem>>, vector<64x128xf32>
    tpu.vector_store %arg9[%c0_58, %c0_59], %232 {strides = array<i32>} : memref<64x128xf32, #tpu.memory_space<vmem>>, vector<64x128xf32>,
    return
  }
  func.func @transform_0(%arg0: i32) -> (i32, i32) {
    %c0_i32 = arith.constant 0 : i32
    %c0_i32_0 = arith.constant 0 : i32
    return %arg0, %c0_i32 : i32, i32
  }
  func.func @transform_1(%arg0: i32) -> (i32, i32) {
    %c0_i32 = arith.constant 0 : i32
    %c0_i32_0 = arith.constant 0 : i32
    %c0_i32_1 = arith.constant 0 : i32
    return %c0_i32, %c0_i32_0 : i32, i32
  }
  func.func @transform_2(%arg0: i32) -> (i32, i32) {
    %c0_i32 = arith.constant 0 : i32
    %c0_i32_0 = arith.constant 0 : i32
    %c0_i32_1 = arith.constant 0 : i32
    return %c0_i32, %c0_i32_0 : i32, i32
  }
  func.func @transform_3(%arg0: i32) -> (i32, i32) {
    %c0_i32 = arith.constant 0 : i32
    %c0_i32_0 = arith.constant 0 : i32
    %c0_i32_1 = arith.constant 0 : i32
    return %c0_i32, %c0_i32_0 : i32, i32
  }
  func.func @transform_4(%arg0: i32) -> (i32, i32) {
    %c0_i32 = arith.constant 0 : i32
    %c0_i32_0 = arith.constant 0 : i32
    %c0_i32_1 = arith.constant 0 : i32
    return %c0_i32, %c0_i32_0 : i32, i32
  }
  func.func @transform_5(%arg0: i32) -> (i32, i32) {
    %c0_i32 = arith.constant 0 : i32
    %c0_i32_0 = arith.constant 0 : i32
    %c0_i32_1 = arith.constant 0 : i32
    return %c0_i32, %c0_i32_0 : i32, i32
  }
  func.func @transform_6(%arg0: i32) -> (i32, i32) {
    %c0_i32 = arith.constant 0 : i32
    %c0_i32_0 = arith.constant 0 : i32
    %c0_i32_1 = arith.constant 0 : i32
    return %c0_i32, %c0_i32_0 : i32, i32
  }
  func.func @transform_7(%arg0: i32) -> (i32, i32) {
    %c0_i32 = arith.constant 0 : i32
    %c0_i32_0 = arith.constant 0 : i32
    %c0_i32_1 = arith.constant 0 : i32
    return %c0_i32, %c0_i32_0 : i32, i32
  }
  func.func @transform_8(%arg0: i32) -> (i32, i32) {
    %c0_i32 = arith.constant 0 : i32
    %c0_i32_0 = arith.constant 0 : i32
    return %arg0, %c0_i32 : i32, i32
  }
}

</mosaic_0001>

<llo_original>
// kernel: generator_forward.1
$region0: #{generator_forward.1}
  #allocation0 [shape = 'u32[]', space=smem, size = 0x4, offset = 0x4, fixed_abs, tag = 'smem constant byte address 0x4 - core index']
  #allocation1 [shape = 'u32[144,128]{1,0:T(1,128)}', space=vmem, size = 0x12000, scoped, tag = 'internal scratch']
  #allocation2 [shape = 'f32[64,256]{1,0:T(8,128)}', space=vmem, size = 0x10000, scoped, tag = 'scratch operand']
  %s0 = inlined_call_operand.vmem [shape: bf16[64,32], index: 0, kind: input, shape index: {}]
  %s1 = inlined_call_operand.hbm [shape: bf16[32,64], index: 1, kind: input, shape index: {}]
  %s2 = inlined_call_operand.vmem [shape: f32[1,64], index: 2, kind: input, shape index: {}]
  %s3 = inlined_call_operand.vmem [shape: bf16[64,256], index: 3, kind: input, shape index: {}]
  %s4 = inlined_call_operand.vmem [shape: bf16[64,256], index: 4, kind: input, shape index: {}]
  %s5 = inlined_call_operand.vmem [shape: f32[1,256], index: 5, kind: input, shape index: {}]
  %s6 = inlined_call_operand.vmem [shape: bf16[64,128], index: 6, kind: input, shape index: {}]
  %s7 = inlined_call_operand.vmem [shape: f32[1,128], index: 7, kind: input, shape index: {}]
  %s8 = inlined_call_operand.vmem [shape: f32[64,128], index: 8, kind: output, shape index: {}]
  %s9 = sld [smem:[#allocation0]]
  $region46: #{generator_forward.1} parent=0
    _
  %s11 = ssub.s32 1, %s9
  %s12 = scalar_select 0, %s11, %s9
  $region1: #{generator_forward.1} parent=0
    #allocation3 [shape = 'u8[8192]{0}', space=vmem, size = 0x2000, scoped, tag = 'input window, operand 1, single buffered']
    #allocation4 [shape = 's32[1]{0}', space=sflag, size = 0x4, scoped, tag = 'scoped memory for generator_forward.1']
    %13 = vsyncpa [#allocation4], 0
    // Predicated region
    $region2: #{generator_forward.1} parent=1 // pred_check
      _
    $region3: #{generator_forward.1} parent=1 // pred_check_branch
      %15 = sbr.rel (0) target = $region5
    $region4: #{generator_forward.1} parent=1 // pred_region
      _
    $region5: #{generator_forward.1} parent=1 // pred_fallthru
      _
    // Predicated region
    $region6: #{generator_forward.1} parent=1 // pred_check
      _
    $region7: #{generator_forward.1} parent=1 // pred_check_branch
      %17 = sbr.rel (0) target = $region9
    $region8: #{generator_forward.1} parent=1 // pred_region
      %s19 = ssub.s32 256, 256
      %20 = vsyncadd [#allocation4], %s19
      %s21 = sshll.u32 [#allocation3], 4
      %s22 = int_to_ptr.vmem [resolvable:$true] %s21
      %27 = dma.hbm_to_vmem [thread:$0]  %s1, 256, %s22, [#allocation4], 64, 64, 4
    $region9: #{generator_forward.1} parent=1 // pred_fallthru
      _
    // Predicated region
    $region10: #{generator_forward.1} parent=1 // pred_check
      _
    $region11: #{generator_forward.1} parent=1 // pred_check_branch
      %29 = sbr.rel (0) target = $region13
    $region12: #{generator_forward.1} parent=1 // pred_region
      _
    $region13: #{generator_forward.1} parent=1 // pred_fallthru
      _
    // Predicated region
    $region14: #{generator_forward.1} parent=1 // pred_check
      _
    $region15: #{generator_forward.1} parent=1 // pred_check_branch
      %31 = sbr.rel (0) target = $region17
    $region16: #{generator_forward.1} parent=1 // pred_region
      _
    $region17: #{generator_forward.1} parent=1 // pred_fallthru
      _
    // Predicated region
    $region18: #{generator_forward.1} parent=1 // pred_check
      _
    $region19: #{generator_forward.1} parent=1 // pred_check_branch
      %33 = sbr.rel (0) target = $region21
    $region20: #{generator_forward.1} parent=1 // pred_region
      _
    $region21: #{generator_forward.1} parent=1 // pred_fallthru
      _
    // Predicated region
    $region22: #{generator_forward.1} parent=1 // pred_check
      _
    $region23: #{generator_forward.1} parent=1 // pred_check_branch
      %35 = sbr.rel (0) target = $region25
    $region24: #{generator_forward.1} parent=1 // pred_region
      _
    $region25: #{generator_forward.1} parent=1 // pred_fallthru
      _
    // Predicated region
    $region26: #{generator_forward.1} parent=1 // pred_check
      _
    $region27: #{generator_forward.1} parent=1 // pred_check_branch
      %37 = sbr.rel (0) target = $region29
    $region28: #{generator_forward.1} parent=1 // pred_region
      _
    $region29: #{generator_forward.1} parent=1 // pred_fallthru
      _
    // Predicated region
    $region30: #{generator_forward.1} parent=1 // pred_check
      _
    $region31: #{generator_forward.1} parent=1 // pred_check_branch
      %39 = sbr.rel (0) target = $region33
    $region32: #{generator_forward.1} parent=1 // pred_region
      _
    $region33: #{generator_forward.1} parent=1 // pred_fallthru
      _
    // Predicated region
    $region34: #{generator_forward.1} parent=1 // pred_check
      _
    $region35: #{generator_forward.1} parent=1 // pred_check_branch
      %41 = sbr.rel (0) target = $region37
    $region36: #{generator_forward.1} parent=1 // pred_region
      %42 = dma.done [#allocation4], 256
    $region37: #{generator_forward.1} parent=1 // pred_fallthru
      _
    %v44 = vld [vmem:[%s0] sm:$0xf]
    %v45 = vld [vmem:[%s0 + $0x4] sm:$0xf]
    %v46 = vld [vmem:[%s0 + $0x8] sm:$0xf]
    %v47 = vld [vmem:[%s0 + $0xc] sm:$0xf]
    %v48 = vld [vmem:[%s0 + $0x10] sm:$0xf]
    %v49 = vld [vmem:[%s0 + $0x14] sm:$0xf]
    %v50 = vld [vmem:[%s0 + $0x18] sm:$0xf]
    %v51 = vld [vmem:[%s0 + $0x1c] sm:$0xf]
    %v52 = vld [vmem:[#allocation3] sm:$0xf]
    %v53 = vld [vmem:[#allocation3 + $0x4] sm:$0xf]
    %v54 = vld [vmem:[#allocation3 + $0x8] sm:$0xf]
    %v55 = vld [vmem:[#allocation3 + $0xc] sm:$0xf]
    %v56 = vld [vmem:[%s2] sm:$0x1]
    %v58 = vlaneseq
    %v59 = vshrl.u32 %v58, 7
    %v60 = vsub.s32 0, %v59
    %v61 = vrot.slane %v56, %v60
    %v71 = vunpack.c.l.b16 %v44
    %v72 = vunpack.c.l.b16 %v45
    %v73 = vunpack.c.l.b16 %v46
    %v74 = vunpack.c.l.b16 %v47
    %v75 = vunpack.c.l.b16 %v48
    %v76 = vunpack.c.l.b16 %v49
    %v77 = vunpack.c.l.b16 %v50
    %v78 = vunpack.c.l.b16 %v51
    %v79 = vpack.c.b16 %v72, %v71
    %v80 = vpack.c.b16 %v74, %v73
    %v81 = vpack.c.b16 %v76, %v75
    %v82 = vpack.c.b16 %v78, %v77
    %v87 = vunpack.c.l.b16 %v52
    %v88 = vunpack.c.l.b16 %v53
    %v89 = vunpack.c.l.b16 %v54
    %v90 = vunpack.c.l.b16 %v55
    %v91 = vpack.c.b16 %v88, %v87
    %v92 = vpack.c.b16 %v90, %v89
    %vm95 = vcmask 261120
    %v97 = vsel %vm95, %v79, 0
    %v100 = vsel %vm95, %v80, 0
    %v103 = vsel %vm95, %v81, 0
    %v106 = vsel %vm95, %v82, 0
    %108 = vmatprep.subr.bf16.mxu0 0
    %109 = vmatpush1.bf16.msra.mxu0 %v91
    %110 = vmatprep.subr.bf16.mxu0 0
    %111 = vmatpush1.bf16.msra.mxu0 %v92
    %112 = vmatprep.subr.bf16.mxu0 0
    %113 = vmatpush1.bf16.msra.mxu0 0
    %114 = vmatprep.subr.bf16.mxu0 0
    %115 = vmatpush1.bf16.msra.mxu0 0
    %116 = vmatprep.subr.bf16.mxu0 0
    %117 = vmatpush1.bf16.msra.mxu0 0
    %118 = vmatprep.subr.bf16.mxu0 0
    %119 = vmatpush1.bf16.msra.mxu0 0
    %120 = vmatprep.subr.bf16.mxu0 0
    %121 = vmatpush1.bf16.msra.mxu0 0
    %122 = vmatprep.subr.bf16.mxu0 0
    %123 = vmatpush1.bf16.msra.mxu0 0
    %124 = vmatprep.subr.bf16.mxu0 0
    %125 = vmatpush1.bf16.msra.mxu0 0
    %126 = vmatprep.subr.bf16.mxu0 0
    %127 = vmatpush1.bf16.msra.mxu0 0
    %128 = vmatprep.subr.bf16.mxu0 0
    %129 = vmatpush1.bf16.msra.mxu0 0
    %130 = vmatprep.subr.bf16.mxu0 0
    %131 = vmatpush1.bf16.msra.mxu0 0
    %132 = vmatprep.subr.bf16.mxu0 0
    %133 = vmatpush1.bf16.msra.mxu0 0
    %134 = vmatprep.subr.bf16.mxu0 0
    %135 = vmatpush1.bf16.msra.mxu0 0
    %136 = vmatprep.subr.bf16.mxu0 0
    %137 = vmatpush1.bf16.msra.mxu0 0
    %138 = vmatprep.subr.bf16.mxu0 0
    %139 = vmatpush1.bf16.msra.mxu0 0
    %140 = vmatprep.mubr.bf16.mxu0 0
    %141 = vmatmul.mubr.bf16.gmra.mrb[0].mxu0 %v97
    %v142 = vpop.f32.mrb[0].mxu0
    %v143 = vadd.f32 %v61, %v142
    %v144 = vpop.f32.mrb[0].mxu0
    %v145 = vpop.f32.mrb[0].mxu0
    %v146 = vadd.f32 %v61, %v145
    %v147 = vpop.f32.mrb[0].mxu0
    %148 = vmatprep.mubr.bf16.mxu0 0
    %149 = vmatmul.mubr.bf16.gmra.mrb[0].mxu0 %v100
    %v150 = vpop.f32.mrb[0].mxu0
    %v151 = vadd.f32 %v61, %v150
    %v152 = vpop.f32.mrb[0].mxu0
    %v153 = vpop.f32.mrb[0].mxu0
    %v154 = vadd.f32 %v61, %v153
    %v155 = vpop.f32.mrb[0].mxu0
    %156 = vmatprep.mubr.bf16.mxu0 0
    %157 = vmatmul.mubr.bf16.gmra.mrb[0].mxu0 %v103
    %v158 = vpop.f32.mrb[0].mxu0
    %v159 = vadd.f32 %v61, %v158
    %v160 = vpop.f32.mrb[0].mxu0
    %v161 = vpop.f32.mrb[0].mxu0
    %v162 = vadd.f32 %v61, %v161
    %v163 = vpop.f32.mrb[0].mxu0
    %164 = vmatprep.mubr.bf16.mxu0 0
    %165 = vmatmul.mubr.bf16.gmra.mrb[0].mxu0 %v106
    %v166 = vpop.f32.mrb[0].mxu0
    %v167 = vadd.f32 %v61, %v166
    %v168 = vpop.f32.mrb[0].mxu0
    %v169 = vpop.f32.mrb[0].mxu0
    %v170 = vadd.f32 %v61, %v169
    %v171 = vpop.f32.mrb[0].mxu0
    %172 = vdwg.mxu0
    %v173 = vmax.f32 %v143, 0.0
    %v174 = vmax.f32 %v146, 0.0
    %v175 = vmax.f32 %v151, 0.0
    %v176 = vmax.f32 %v154, 0.0
    %v177 = vmax.f32 %v159, 0.0
    %v178 = vmax.f32 %v162, 0.0
    %v179 = vmax.f32 %v167, 0.0
    %v180 = vmax.f32 %v170, 0.0
    %v181 = vpack.c.bf16 %v174, %v173
    %v182 = vpack.c.bf16 %v176, %v175
    %v183 = vpack.c.bf16 %v178, %v177
    %v184 = vpack.c.bf16 %v180, %v179
    %v185 = vld [vmem:[%s3] sm:$0xff]
    %v186 = vld [vmem:[%s3 + $0x8] sm:$0xff]
    %v187 = vld [vmem:[%s3 + $0x10] sm:$0xff]
    %v188 = vld [vmem:[%s3 + $0x18] sm:$0xff]
    %v189 = vld [vmem:[%s3 + $0x20] sm:$0xff]
    %v190 = vld [vmem:[%s3 + $0x28] sm:$0xff]
    %v191 = vld [vmem:[%s3 + $0x30] sm:$0xff]
    %v192 = vld [vmem:[%s3 + $0x38] sm:$0xff]
    %v193 = vld [vmem:[%s5] sm:$0x3]
    %v195 = vlaneseq
    %v196 = vshrl.u32 %v195, 7
    %v197 = vsub.s32 0, %v196
    %v198 = vrot.slane %v193, %v197
    %v199 = vlaneseq
    %v200 = vshrl.u32 %v199, 7
    %v201 = vsub.s32 1, %v200
    %v202 = vrot.slane %v193, %v201
    %v213 = vunpack.c.l.b16 %v185
    %v214 = vunpack.c.h.b16 %v185
    %v215 = vunpack.c.l.b16 %v186
    %v216 = vunpack.c.h.b16 %v186
    %v217 = vunpack.c.l.b16 %v187
    %v218 = vunpack.c.h.b16 %v187
    %v219 = vunpack.c.l.b16 %v188
    %v220 = vunpack.c.h.b16 %v188
    %v221 = vunpack.c.l.b16 %v189
    %v222 = vunpack.c.h.b16 %v189
    %v223 = vunpack.c.l.b16 %v190
    %v224 = vunpack.c.h.b16 %v190
    %v225 = vunpack.c.l.b16 %v191
    %v226 = vunpack.c.h.b16 %v191
    %v227 = vunpack.c.l.b16 %v192
    %v228 = vunpack.c.h.b16 %v192
    %v229 = vpack.c.b16 %v215, %v213
    %v230 = vpack.c.b16 %v216, %v214
    %v231 = vpack.c.b16 %v219, %v217
    %v232 = vpack.c.b16 %v220, %v218
    %v233 = vpack.c.b16 %v223, %v221
    %v234 = vpack.c.b16 %v224, %v222
    %v235 = vpack.c.b16 %v227, %v225
    %v236 = vpack.c.b16 %v228, %v226
    %vm245 = vcmask 523264
    %v247 = vsel %vm245, %v181, 0
    %v250 = vsel %vm245, %v182, 0
    %v253 = vsel %vm245, %v183, 0
    %v256 = vsel %vm245, %v184, 0
    %258 = vmatprep.subr.bf16.mxu0 %v230
    %259 = vmatpush1.bf16.msra.mxu0 %v229
    %260 = vmatprep.subr.bf16.mxu0 %v232
    %261 = vmatpush1.bf16.msra.mxu0 %v231
    %262 = vmatprep.subr.bf16.mxu0 %v234
    %263 = vmatpush1.bf16.msra.mxu0 %v233
    %264 = vmatprep.subr.bf16.mxu0 %v236
    %265 = vmatpush1.bf16.msra.mxu0 %v235
    %266 = vmatprep.subr.bf16.mxu0 0
    %267 = vmatpush1.bf16.msra.mxu0 0
    %268 = vmatprep.subr.bf16.mxu0 0
    %269 = vmatpush1.bf16.msra.mxu0 0
    %270 = vmatprep.subr.bf16.mxu0 0
    %271 = vmatpush1.bf16.msra.mxu0 0
    %272 = vmatprep.subr.bf16.mxu0 0
    %273 = vmatpush1.bf16.msra.mxu0 0
    %274 = vmatprep.subr.bf16.mxu0 0
    %275 = vmatpush1.bf16.msra.mxu0 0
    %276 = vmatprep.subr.bf16.mxu0 0
    %277 = vmatpush1.bf16.msra.mxu0 0
    %278 = vmatprep.subr.bf16.mxu0 0
    %279 = vmatpush1.bf16.msra.mxu0 0
    %280 = vmatprep.subr.bf16.mxu0 0
    %281 = vmatpush1.bf16.msra.mxu0 0
    %282 = vmatprep.subr.bf16.mxu0 0
    %283 = vmatpush1.bf16.msra.mxu0 0
    %284 = vmatprep.subr.bf16.mxu0 0
    %285 = vmatpush1.bf16.msra.mxu0 0
    %286 = vmatprep.subr.bf16.mxu0 0
    %287 = vmatpush1.bf16.msra.mxu0 0
    %288 = vmatprep.subr.bf16.mxu0 0
    %289 = vmatpush1.bf16.msra.mxu0 0
    %290 = vmatprep.mubr.bf16.mxu0 0
    %291 = vmatmul.mubr.bf16.gmra.mrb[0].mxu0 %v247
    %v292 = vpop.f32.mrb[0].mxu0
    %v293 = vadd.f32 %v198, %v292
    %v294 = vpop.f32.mrb[0].mxu0
    %v295 = vadd.f32 %v202, %v294
    %v296 = vpop.f32.mrb[0].mxu0
    %v297 = vadd.f32 %v198, %v296
    %v298 = vpop.f32.mrb[0].mxu0
    %v299 = vadd.f32 %v202, %v298
    %300 = vmatprep.mubr.bf16.mxu0 0
    %301 = vmatmul.mubr.bf16.gmra.mrb[0].mxu0 %v250
    %v302 = vpop.f32.mrb[0].mxu0
    %v303 = vadd.f32 %v198, %v302
    %v304 = vpop.f32.mrb[0].mxu0
    %v305 = vadd.f32 %v202, %v304
    %v306 = vpop.f32.mrb[0].mxu0
    %v307 = vadd.f32 %v198, %v306
    %v308 = vpop.f32.mrb[0].mxu0
    %v309 = vadd.f32 %v202, %v308
    %310 = vmatprep.mubr.bf16.mxu0 0
    %311 = vmatmul.mubr.bf16.gmra.mrb[0].mxu0 %v253
    %v312 = vpop.f32.mrb[0].mxu0
    %v313 = vadd.f32 %v198, %v312
    %v314 = vpop.f32.mrb[0].mxu0
    %v315 = vadd.f32 %v202, %v314
    %v316 = vpop.f32.mrb[0].mxu0
    %v317 = vadd.f32 %v198, %v316
    %v318 = vpop.f32.mrb[0].mxu0
    %v319 = vadd.f32 %v202, %v318
    %320 = vmatprep.mubr.bf16.mxu0 0
    %321 = vmatmul.mubr.bf16.gmra.mrb[0].mxu0 %v256
    %v322 = vpop.f32.mrb[0].mxu0
    %v323 = vadd.f32 %v198, %v322
    %v324 = vpop.f32.mrb[0].mxu0
    %v325 = vadd.f32 %v202, %v324
    %v326 = vpop.f32.mrb[0].mxu0
    %v327 = vadd.f32 %v198, %v326
    %v328 = vpop.f32.mrb[0].mxu0
    %v329 = vadd.f32 %v202, %v328
    %330 = vdwg.mxu0
    %331 = vst [vmem:[#allocation2] sm:$0xff] %v293
    %332 = vst [vmem:[#allocation2 + $0x8] sm:$0xff] %v295
    %333 = vst [vmem:[#allocation2 + $0x10] sm:$0xff] %v297
    %334 = vst [vmem:[#allocation2 + $0x18] sm:$0xff] %v299
    %335 = vst [vmem:[#allocation2 + $0x20] sm:$0xff] %v303
    %336 = vst [vmem:[#allocation2 + $0x28] sm:$0xff] %v305
    %337 = vst [vmem:[#allocation2 + $0x30] sm:$0xff] %v307
    %338 = vst [vmem:[#allocation2 + $0x38] sm:$0xff] %v309
    %339 = vst [vmem:[#allocation2 + $0x40] sm:$0xff] %v313
    %340 = vst [vmem:[#allocation2 + $0x48] sm:$0xff] %v315
    %341 = vst [vmem:[#allocation2 + $0x50] sm:$0xff] %v317
    %342 = vst [vmem:[#allocation2 + $0x58] sm:$0xff] %v319
    %343 = vst [vmem:[#allocation2 + $0x60] sm:$0xff] %v323
    %344 = vst [vmem:[#allocation2 + $0x68] sm:$0xff] %v325
    %345 = vst [vmem:[#allocation2 + $0x70] sm:$0xff] %v327
    %346 = vst [vmem:[#allocation2 + $0x78] sm:$0xff] %v329
    %v347 = vld [vmem:[%s4] sm:$0xff]
    %v348 = vld [vmem:[%s4 + $0x8] sm:$0xff]
    %v349 = vld [vmem:[%s4 + $0x10] sm:$0xff]
    %v350 = vld [vmem:[%s4 + $0x18] sm:$0xff]
    %v351 = vld [vmem:[%s4 + $0x20] sm:$0xff]
    %v352 = vld [vmem:[%s4 + $0x28] sm:$0xff]
    %v353 = vld [vmem:[%s4 + $0x30] sm:$0xff]
    %v354 = vld [vmem:[%s4 + $0x38] sm:$0xff]
    %v355 = vld [vmem:[#allocation2] sm:$0xff]
    %v356 = vld [vmem:[#allocation2 + $0x8] sm:$0xff]
    %v365 = vunpack.c.l.b16 %v347
    %v366 = vunpack.c.h.b16 %v347
    %v367 = vunpack.c.l.b16 %v348
    %v368 = vunpack.c.h.b16 %v348
    %v369 = vunpack.c.l.b16 %v349
    %v370 = vunpack.c.h.b16 %v349
    %v371 = vunpack.c.l.b16 %v350
    %v372 = vunpack.c.h.b16 %v350
    %v373 = vunpack.c.l.b16 %v351
    %v374 = vunpack.c.h.b16 %v351
    %v375 = vunpack.c.l.b16 %v352
    %v376 = vunpack.c.h.b16 %v352
    %v377 = vunpack.c.l.b16 %v353
    %v378 = vunpack.c.h.b16 %v353
    %v379 = vunpack.c.l.b16 %v354
    %v380 = vunpack.c.h.b16 %v354
    %v381 = vpack.c.b16 %v367, %v365
    %v382 = vpack.c.b16 %v368, %v366
    %v383 = vpack.c.b16 %v371, %v369
    %v384 = vpack.c.b16 %v372, %v370
    %v385 = vpack.c.b16 %v375, %v373
    %v386 = vpack.c.b16 %v376, %v374
    %v387 = vpack.c.b16 %v379, %v377
    %v388 = vpack.c.b16 %v380, %v378
    %v398 = vsel %vm245, 0, 0
    %400 = vmatprep.subr.bf16.mxu0 %v382
    %401 = vmatpush1.bf16.msra.mxu0 %v381
    %402 = vmatprep.subr.bf16.mxu0 %v384
    %403 = vmatpush1.bf16.msra.mxu0 %v383
    %404 = vmatprep.subr.bf16.mxu0 %v386
    %405 = vmatpush1.bf16.msra.mxu0 %v385
    %406 = vmatprep.subr.bf16.mxu0 %v388
    %407 = vmatpush1.bf16.msra.mxu0 %v387
    %408 = vmatprep.subr.bf16.mxu0 0
    %409 = vmatpush1.bf16.msra.mxu0 0
    %410 = vmatprep.subr.bf16.mxu0 0
    %411 = vmatpush1.bf16.msra.mxu0 0
    %412 = vmatprep.subr.bf16.mxu0 0
    %413 = vmatpush1.bf16.msra.mxu0 0
    %414 = vmatprep.subr.bf16.mxu0 0
    %415 = vmatpush1.bf16.msra.mxu0 0
    %416 = vmatprep.subr.bf16.mxu0 0
    %417 = vmatpush1.bf16.msra.mxu0 0
    %418 = vmatprep.subr.bf16.mxu0 0
    %419 = vmatpush1.bf16.msra.mxu0 0
    %420 = vmatprep.subr.bf16.mxu0 0
    %421 = vmatpush1.bf16.msra.mxu0 0
    %422 = vmatprep.subr.bf16.mxu0 0
    %423 = vmatpush1.bf16.msra.mxu0 0
    %424 = vmatprep.subr.bf16.mxu0 0
    %425 = vmatpush1.bf16.msra.mxu0 0
    %426 = vmatprep.subr.bf16.mxu0 0
    %427 = vmatpush1.bf16.msra.mxu0 0
    %428 = vmatprep.subr.bf16.mxu0 0
    %429 = vmatpush1.bf16.msra.mxu0 0
    %430 = vmatprep.subr.bf16.mxu0 0
    %431 = vmatpush1.bf16.msra.mxu0 0
    %432 = vmatprep.mubr.bf16.mxu0 0
    %433 = vmatmul.mubr.bf16.gmra.mrb[0].mxu0 %v398
    %v434 = vpop.f32.mrb[0].mxu0
    %v435 = vadd.f32 0.0, %v434
    %v436 = vpop.f32.mrb[0].mxu0
    %v437 = vadd.f32 0.0, %v436
    %v438 = vpop.f32.mrb[0].mxu0
    %v439 = vpop.f32.mrb[0].mxu0
    %440 = vdwg.mxu0
    %v441 = vadd.f32 %v355, %v435
    %v442 = vadd.f32 %v356, %v437
    %v443 = vxor.u32 %v441, 2147483648
    %v444 = vxor.u32 %v442, 2147483648
    %v445 = vmul.f32 %v443, 1.442695
    %v446 = vpow.pop %v445
    %v447 = vmul.f32 %v444, 1.442695
    %v448 = vpow.pop %v447
    %v449 = vadd.f32 %v446, 1.0
    %v450 = vadd.f32 %v448, 1.0
    %v451 = vrcp.pop %v449
    %v452 = vmul.f32 1.0, %v451
    %v453 = vrcp.pop %v450
    %v454 = vmul.f32 1.0, %v453
    %v455 = vtanh.pop %v442
    %v456 = vmul.f32 %v452, 0.0
    %458 = vrot.lane.b32.xlu0 %v455, 64
    %v459 = vpop.permute.xlu0 %458
    %v461 = vmul.f32 %v452, %v459
    %463 = vrot.lane.b32.xlu0 %v461, 64
    %v464 = vpop.permute.xlu0 %463
    %v466 = vadd.f32 %v456, %v464
    %v467 = vtanh.pop %v466
    %469 = vrot.lane.b32.xlu0 %v467, 64
    %v470 = vpop.permute.xlu0 %469
    %v472 = vmul.f32 %v454, %v470
    %v473 = vld [vmem:[#allocation2 + $0x10] sm:$0xff]
    %v474 = vld [vmem:[#allocation2 + $0x18] sm:$0xff]
    %v475 = vpack.c.bf16 %v472, %v472
    %v477 = vsel %vm245, %v475, 0
    %479 = vmatprep.subr.bf16.mxu0 %v382
    %480 = vmatpush1.bf16.msra.mxu0 %v381
    %481 = vmatprep.subr.bf16.mxu0 %v384
    %482 = vmatpush1.bf16.msra.mxu0 %v383
    %483 = vmatprep.subr.bf16.mxu0 %v386
    %484 = vmatpush1.bf16.msra.mxu0 %v385
    %485 = vmatprep.subr.bf16.mxu0 %v388
    %486 = vmatpush1.bf16.msra.mxu0 %v387
    %487 = vmatprep.subr.bf16.mxu0 0
    %488 = vmatpush1.bf16.msra.mxu0 0
    %489 = vmatprep.subr.bf16.mxu0 0
    %490 = vmatpush1.bf16.msra.mxu0 0
    %491 = vmatprep.subr.bf16.mxu0 0
    %492 = vmatpush1.bf16.msra.mxu0 0
    %493 = vmatprep.subr.bf16.mxu0 0
    %494 = vmatpush1.bf16.msra.mxu0 0
    %495 = vmatprep.subr.bf16.mxu0 0
    %496 = vmatpush1.bf16.msra.mxu0 0
    %497 = vmatprep.subr.bf16.mxu0 0
    %498 = vmatpush1.bf16.msra.mxu0 0
    %499 = vmatprep.subr.bf16.mxu0 0
    %500 = vmatpush1.bf16.msra.mxu0 0
    %501 = vmatprep.subr.bf16.mxu0 0
    %502 = vmatpush1.bf16.msra.mxu0 0
    %503 = vmatprep.subr.bf16.mxu0 0
    %504 = vmatpush1.bf16.msra.mxu0 0
    %505 = vmatprep.subr.bf16.mxu0 0
    %506 = vmatpush1.bf16.msra.mxu0 0
    %507 = vmatprep.subr.bf16.mxu0 0
    %508 = vmatpush1.bf16.msra.mxu0 0
    %509 = vmatprep.subr.bf16.mxu0 0
    %510 = vmatpush1.bf16.msra.mxu0 0
    %511 = vmatprep.mubr.bf16.mxu0 0
    %512 = vmatmul.mubr.bf16.gmra.mrb[0].mxu0 %v477
    %v513 = vpop.f32.mrb[0].mxu0
    %v514 = vadd.f32 0.0, %v513
    %v515 = vpop.f32.mrb[0].mxu0
    %v516 = vadd.f32 0.0, %v515
    %v517 = vpop.f32.mrb[0].mxu0
    %v518 = vpop.f32.mrb[0].mxu0
    %519 = vdwg.mxu0
    %v520 = vadd.f32 %v473, %v514
    %v521 = vadd.f32 %v474, %v516
    %v522 = vxor.u32 %v520, 2147483648
    %v523 = vxor.u32 %v521, 2147483648
    %v524 = vmul.f32 %v522, 1.442695
    %v525 = vpow.pop %v524
    %v526 = vmul.f32 %v523, 1.442695
    %v527 = vpow.pop %v526
    %v528 = vadd.f32 %v525, 1.0
    %v529 = vadd.f32 %v527, 1.0
    %v530 = vrcp.pop %v528
    %v531 = vmul.f32 1.0, %v530
    %v532 = vrcp.pop %v529
    %v533 = vmul.f32 1.0, %v532
    %v534 = vtanh.pop %v521
    %v535 = vmul.f32 %v531, %v466
    %537 = vrot.lane.b32.xlu0 %v534, 64
    %v538 = vpop.permute.xlu0 %537
    %v540 = vmul.f32 %v531, %v538
    %542 = vrot.lane.b32.xlu0 %v540, 64
    %v543 = vpop.permute.xlu0 %542
    %v545 = vadd.f32 %v535, %v543
    %v546 = vtanh.pop %v545
    %548 = vrot.lane.b32.xlu0 %v546, 64
    %v549 = vpop.permute.xlu0 %548
    %v551 = vmul.f32 %v533, %v549
    %v552 = vld [vmem:[#allocation2 + $0x20] sm:$0xff]
    %v553 = vld [vmem:[#allocation2 + $0x28] sm:$0xff]
    %v554 = vpack.c.bf16 %v551, %v551
    %v556 = vsel %vm245, %v554, 0
    %558 = vmatprep.subr.bf16.mxu0 %v382
    %559 = vmatpush1.bf16.msra.mxu0 %v381
    %560 = vmatprep.subr.bf16.mxu0 %v384
    %561 = vmatpush1.bf16.msra.mxu0 %v383
    %562 = vmatprep.subr.bf16.mxu0 %v386
    %563 = vmatpush1.bf16.msra.mxu0 %v385
    %564 = vmatprep.subr.bf16.mxu0 %v388
    %565 = vmatpush1.bf16.msra.mxu0 %v387
    %566 = vmatprep.subr.bf16.mxu0 0
    %567 = vmatpush1.bf16.msra.mxu0 0
    %568 = vmatprep.subr.bf16.mxu0 0
    %569 = vmatpush1.bf16.msra.mxu0 0
    %570 = vmatprep.subr.bf16.mxu0 0
    %571 = vmatpush1.bf16.msra.mxu0 0
    %572 = vmatprep.subr.bf16.mxu0 0
    %573 = vmatpush1.bf16.msra.mxu0 0
    %574 = vmatprep.subr.bf16.mxu0 0
    %575 = vmatpush1.bf16.msra.mxu0 0
    %576 = vmatprep.subr.bf16.mxu0 0
    %577 = vmatpush1.bf16.msra.mxu0 0
    %578 = vmatprep.subr.bf16.mxu0 0
    %579 = vmatpush1.bf16.msra.mxu0 0
    %580 = vmatprep.subr.bf16.mxu0 0
    %581 = vmatpush1.bf16.msra.mxu0 0
    %582 = vmatprep.subr.bf16.mxu0 0
    %583 = vmatpush1.bf16.msra.mxu0 0
    %584 = vmatprep.subr.bf16.mxu0 0
    %585 = vmatpush1.bf16.msra.mxu0 0
    %586 = vmatprep.subr.bf16.mxu0 0
    %587 = vmatpush1.bf16.msra.mxu0 0
    %588 = vmatprep.subr.bf16.mxu0 0
    %589 = vmatpush1.bf16.msra.mxu0 0
    %590 = vmatprep.mubr.bf16.mxu0 0
    %591 = vmatmul.mubr.bf16.gmra.mrb[0].mxu0 %v556
    %v592 = vpop.f32.mrb[0].mxu0
    %v593 = vadd.f32 0.0, %v592
    %v594 = vpop.f32.mrb[0].mxu0
    %v595 = vadd.f32 0.0, %v594
    %v596 = vpop.f32.mrb[0].mxu0
    %v597 = vpop.f32.mrb[0].mxu0
    %598 = vdwg.mxu0
    %v599 = vadd.f32 %v552, %v593
    %v600 = vadd.f32 %v553, %v595
    %v601 = vxor.u32 %v599, 2147483648
    %v602 = vxor.u32 %v600, 2147483648
    %v603 = vmul.f32 %v601, 1.442695
    %v604 = vpow.pop %v603
    %v605 = vmul.f32 %v602, 1.442695
    %v606 = vpow.pop %v605
    %v607 = vadd.f32 %v604, 1.0
    %v608 = vadd.f32 %v606, 1.0
    %v609 = vrcp.pop %v607
    %v610 = vmul.f32 1.0, %v609
    %v611 = vrcp.pop %v608
    %v612 = vmul.f32 1.0, %v611
    %v613 = vtanh.pop %v600
    %v614 = vmul.f32 %v610, %v545
    %616 = vrot.lane.b32.xlu0 %v613, 64
    %v617 = vpop.permute.xlu0 %616
    %v619 = vmul.f32 %v610, %v617
    %621 = vrot.lane.b32.xlu0 %v619, 64
    %v622 = vpop.permute.xlu0 %621
    %v624 = vadd.f32 %v614, %v622
    %v625 = vtanh.pop %v624
    %627 = vrot.lane.b32.xlu0 %v625, 64
    %v628 = vpop.permute.xlu0 %627
    %v630 = vmul.f32 %v612, %v628
    %v631 = vld [vmem:[#allocation2 + $0x30] sm:$0xff]
    %v632 = vld [vmem:[#allocation2 + $0x38] sm:$0xff]
    %v633 = vpack.c.bf16 %v630, %v630
    %v635 = vsel %vm245, %v633, 0
    %637 = vmatprep.subr.bf16.mxu0 %v382
    %638 = vmatpush1.bf16.msra.mxu0 %v381
    %639 = vmatprep.subr.bf16.mxu0 %v384
    %640 = vmatpush1.bf16.msra.mxu0 %v383
    %641 = vmatprep.subr.bf16.mxu0 %v386
    %642 = vmatpush1.bf16.msra.mxu0 %v385
    %643 = vmatprep.subr.bf16.mxu0 %v388
    %644 = vmatpush1.bf16.msra.mxu0 %v387
    %645 = vmatprep.subr.bf16.mxu0 0
    %646 = vmatpush1.bf16.msra.mxu0 0
    %647 = vmatprep.subr.bf16.mxu0 0
    %648 = vmatpush1.bf16.msra.mxu0 0
    %649 = vmatprep.subr.bf16.mxu0 0
    %650 = vmatpush1.bf16.msra.mxu0 0
    %651 = vmatprep.subr.bf16.mxu0 0
    %652 = vmatpush1.bf16.msra.mxu0 0
    %653 = vmatprep.subr.bf16.mxu0 0
    %654 = vmatpush1.bf16.msra.mxu0 0
    %655 = vmatprep.subr.bf16.mxu0 0
    %656 = vmatpush1.bf16.msra.mxu0 0
    %657 = vmatprep.subr.bf16.mxu0 0
    %658 = vmatpush1.bf16.msra.mxu0 0
    %659 = vmatprep.subr.bf16.mxu0 0
    %660 = vmatpush1.bf16.msra.mxu0 0
    %661 = vmatprep.subr.bf16.mxu0 0
    %662 = vmatpush1.bf16.msra.mxu0 0
    %663 = vmatprep.subr.bf16.mxu0 0
    %664 = vmatpush1.bf16.msra.mxu0 0
    %665 = vmatprep.subr.bf16.mxu0 0
    %666 = vmatpush1.bf16.msra.mxu0 0
    %667 = vmatprep.subr.bf16.mxu0 0
    %668 = vmatpush1.bf16.msra.mxu0 0
    %669 = vmatprep.mubr.bf16.mxu0 0
    %670 = vmatmul.mubr.bf16.gmra.mrb[0].mxu0 %v635
    %v671 = vpop.f32.mrb[0].mxu0
    %v672 = vadd.f32 0.0, %v671
    %v673 = vpop.f32.mrb[0].mxu0
    %v674 = vadd.f32 0.0, %v673
    %v675 = vpop.f32.mrb[0].mxu0
    %v676 = vpop.f32.mrb[0].mxu0
    %677 = vdwg.mxu0
    %v678 = vadd.f32 %v631, %v672
    %v679 = vadd.f32 %v632, %v674
    %v680 = vxor.u32 %v678, 2147483648
    %v681 = vxor.u32 %v679, 2147483648
    %v682 = vmul.f32 %v680, 1.442695
    %v683 = vpow.pop %v682
    %v684 = vmul.f32 %v681, 1.442695
    %v685 = vpow.pop %v684
    %v686 = vadd.f32 %v683, 1.0
    %v687 = vadd.f32 %v685, 1.0
    %v688 = vrcp.pop %v686
    %v689 = vmul.f32 1.0, %v688
    %v690 = vrcp.pop %v687
    %v691 = vmul.f32 1.0, %v690
    %v692 = vtanh.pop %v679
    %v693 = vmul.f32 %v689, %v624
    %695 = vrot.lane.b32.xlu0 %v692, 64
    %v696 = vpop.permute.xlu0 %695
    %v698 = vmul.f32 %v689, %v696
    %700 = vrot.lane.b32.xlu0 %v698, 64
    %v701 = vpop.permute.xlu0 %700
    %v703 = vadd.f32 %v693, %v701
    %v704 = vtanh.pop %v703
    %706 = vrot.lane.b32.xlu0 %v704, 64
    %v707 = vpop.permute.xlu0 %706
    %v709 = vmul.f32 %v691, %v707
    %v710 = vld [vmem:[#allocation2 + $0x40] sm:$0xff]
    %v711 = vld [vmem:[#allocation2 + $0x48] sm:$0xff]
    %v712 = vpack.c.bf16 %v709, %v709
    %v714 = vsel %vm245, %v712, 0
    %716 = vmatprep.subr.bf16.mxu0 %v382
    %717 = vmatpush1.bf16.msra.mxu0 %v381
    %718 = vmatprep.subr.bf16.mxu0 %v384
    %719 = vmatpush1.bf16.msra.mxu0 %v383
    %720 = vmatprep.subr.bf16.mxu0 %v386
    %721 = vmatpush1.bf16.msra.mxu0 %v385
    %722 = vmatprep.subr.bf16.mxu0 %v388
    %723 = vmatpush1.bf16.msra.mxu0 %v387
    %724 = vmatprep.subr.bf16.mxu0 0
    %725 = vmatpush1.bf16.msra.mxu0 0
    %726 = vmatprep.subr.bf16.mxu0 0
    %727 = vmatpush1.bf16.msra.mxu0 0
    %728 = vmatprep.subr.bf16.mxu0 0
    %729 = vmatpush1.bf16.msra.mxu0 0
    %730 = vmatprep.subr.bf16.mxu0 0
    %731 = vmatpush1.bf16.msra.mxu0 0
    %732 = vmatprep.subr.bf16.mxu0 0
    %733 = vmatpush1.bf16.msra.mxu0 0
    %734 = vmatprep.subr.bf16.mxu0 0
    %735 = vmatpush1.bf16.msra.mxu0 0
    %736 = vmatprep.subr.bf16.mxu0 0
    %737 = vmatpush1.bf16.msra.mxu0 0
    %738 = vmatprep.subr.bf16.mxu0 0
    %739 = vmatpush1.bf16.msra.mxu0 0
    %740 = vmatprep.subr.bf16.mxu0 0
    %741 = vmatpush1.bf16.msra.mxu0 0
    %742 = vmatprep.subr.bf16.mxu0 0
    %743 = vmatpush1.bf16.msra.mxu0 0
    %744 = vmatprep.subr.bf16.mxu0 0
    %745 = vmatpush1.bf16.msra.mxu0 0
    %746 = vmatprep.subr.bf16.mxu0 0
    %747 = vmatpush1.bf16.msra.mxu0 0
    %748 = vmatprep.mubr.bf16.mxu0 0
    %749 = vmatmul.mubr.bf16.gmra.mrb[0].mxu0 %v714
    %v750 = vpop.f32.mrb[0].mxu0
    %v751 = vadd.f32 0.0, %v750
    %v752 = vpop.f32.mrb[0].mxu0
    %v753 = vadd.f32 0.0, %v752
    %v754 = vpop.f32.mrb[0].mxu0
    %v755 = vpop.f32.mrb[0].mxu0
    %756 = vdwg.mxu0
    %v757 = vadd.f32 %v710, %v751
    %v758 = vadd.f32 %v711, %v753
    %v759 = vxor.u32 %v757, 2147483648
    %v760 = vxor.u32 %v758, 2147483648
    %v761 = vmul.f32 %v759, 1.442695
    %v762 = vpow.pop %v761
    %v763 = vmul.f32 %v760, 1.442695
    %v764 = vpow.pop %v763
    %v765 = vadd.f32 %v762, 1.0
    %v766 = vadd.f32 %v764, 1.0
    %v767 = vrcp.pop %v765
    %v768 = vmul.f32 1.0, %v767
    %v769 = vrcp.pop %v766
    %v770 = vmul.f32 1.0, %v769
    %v771 = vtanh.pop %v758
    %v772 = vmul.f32 %v768, %v703
    %774 = vrot.lane.b32.xlu0 %v771, 64
    %v775 = vpop.permute.xlu0 %774
    %v777 = vmul.f32 %v768, %v775
    %779 = vrot.lane.b32.xlu0 %v777, 64
    %v780 = vpop.permute.xlu0 %779
    %v782 = vadd.f32 %v772, %v780
    %v783 = vtanh.pop %v782
    %785 = vrot.lane.b32.xlu0 %v783, 64
    %v786 = vpop.permute.xlu0 %785
    %v788 = vmul.f32 %v770, %v786
    %v789 = vld [vmem:[#allocation2 + $0x50] sm:$0xff]
    %v790 = vld [vmem:[#allocation2 + $0x58] sm:$0xff]
    %v791 = vpack.c.bf16 %v788, %v788
    %v793 = vsel %vm245, %v791, 0
    %795 = vmatprep.subr.bf16.mxu0 %v382
    %796 = vmatpush1.bf16.msra.mxu0 %v381
    %797 = vmatprep.subr.bf16.mxu0 %v384
    %798 = vmatpush1.bf16.msra.mxu0 %v383
    %799 = vmatprep.subr.bf16.mxu0 %v386
    %800 = vmatpush1.bf16.msra.mxu0 %v385
    %801 = vmatprep.subr.bf16.mxu0 %v388
    %802 = vmatpush1.bf16.msra.mxu0 %v387
    %803 = vmatprep.subr.bf16.mxu0 0
    %804 = vmatpush1.bf16.msra.mxu0 0
    %805 = vmatprep.subr.bf16.mxu0 0
    %806 = vmatpush1.bf16.msra.mxu0 0
    %807 = vmatprep.subr.bf16.mxu0 0
    %808 = vmatpush1.bf16.msra.mxu0 0
    %809 = vmatprep.subr.bf16.mxu0 0
    %810 = vmatpush1.bf16.msra.mxu0 0
    %811 = vmatprep.subr.bf16.mxu0 0
    %812 = vmatpush1.bf16.msra.mxu0 0
    %813 = vmatprep.subr.bf16.mxu0 0
    %814 = vmatpush1.bf16.msra.mxu0 0
    %815 = vmatprep.subr.bf16.mxu0 0
    %816 = vmatpush1.bf16.msra.mxu0 0
    %817 = vmatprep.subr.bf16.mxu0 0
    %818 = vmatpush1.bf16.msra.mxu0 0
    %819 = vmatprep.subr.bf16.mxu0 0
    %820 = vmatpush1.bf16.msra.mxu0 0
    %821 = vmatprep.subr.bf16.mxu0 0
    %822 = vmatpush1.bf16.msra.mxu0 0
    %823 = vmatprep.subr.bf16.mxu0 0
    %824 = vmatpush1.bf16.msra.mxu0 0
    %825 = vmatprep.subr.bf16.mxu0 0
    %826 = vmatpush1.bf16.msra.mxu0 0
    %827 = vmatprep.mubr.bf16.mxu0 0
    %828 = vmatmul.mubr.bf16.gmra.mrb[0].mxu0 %v793
    %v829 = vpop.f32.mrb[0].mxu0
    %v830 = vadd.f32 0.0, %v829
    %v831 = vpop.f32.mrb[0].mxu0
    %v832 = vadd.f32 0.0, %v831
    %v833 = vpop.f32.mrb[0].mxu0
    %v834 = vpop.f32.mrb[0].mxu0
    %835 = vdwg.mxu0
    %v836 = vadd.f32 %v789, %v830
    %v837 = vadd.f32 %v790, %v832
    %v838 = vxor.u32 %v836, 2147483648
    %v839 = vxor.u32 %v837, 2147483648
    %v840 = vmul.f32 %v838, 1.442695
    %v841 = vpow.pop %v840
    %v842 = vmul.f32 %v839, 1.442695
    %v843 = vpow.pop %v842
    %v844 = vadd.f32 %v841, 1.0
    %v845 = vadd.f32 %v843, 1.0
    %v846 = vrcp.pop %v844
    %v847 = vmul.f32 1.0, %v846
    %v848 = vrcp.pop %v845
    %v849 = vmul.f32 1.0, %v848
    %v850 = vtanh.pop %v837
    %v851 = vmul.f32 %v847, %v782
    %853 = vrot.lane.b32.xlu0 %v850, 64
    %v854 = vpop.permute.xlu0 %853
    %v856 = vmul.f32 %v847, %v854
    %858 = vrot.lane.b32.xlu0 %v856, 64
    %v859 = vpop.permute.xlu0 %858
    %v861 = vadd.f32 %v851, %v859
    %v862 = vtanh.pop %v861
    %864 = vrot.lane.b32.xlu0 %v862, 64
    %v865 = vpop.permute.xlu0 %864
    %v867 = vmul.f32 %v849, %v865
    %v868 = vld [vmem:[#allocation2 + $0x60] sm:$0xff]
    %v869 = vld [vmem:[#allocation2 + $0x68] sm:$0xff]
    %v870 = vpack.c.bf16 %v867, %v867
    %v872 = vsel %vm245, %v870, 0
    %874 = vmatprep.subr.bf16.mxu0 %v382
    %875 = vmatpush1.bf16.msra.mxu0 %v381
    %876 = vmatprep.subr.bf16.mxu0 %v384
    %877 = vmatpush1.bf16.msra.mxu0 %v383
    %878 = vmatprep.subr.bf16.mxu0 %v386
    %879 = vmatpush1.bf16.msra.mxu0 %v385
    %880 = vmatprep.subr.bf16.mxu0 %v388
    %881 = vmatpush1.bf16.msra.mxu0 %v387
    %882 = vmatprep.subr.bf16.mxu0 0
    %883 = vmatpush1.bf16.msra.mxu0 0
    %884 = vmatprep.subr.bf16.mxu0 0
    %885 = vmatpush1.bf16.msra.mxu0 0
    %886 = vmatprep.subr.bf16.mxu0 0
    %887 = vmatpush1.bf16.msra.mxu0 0
    %888 = vmatprep.subr.bf16.mxu0 0
    %889 = vmatpush1.bf16.msra.mxu0 0
    %890 = vmatprep.subr.bf16.mxu0 0
    %891 = vmatpush1.bf16.msra.mxu0 0
    %892 = vmatprep.subr.bf16.mxu0 0
    %893 = vmatpush1.bf16.msra.mxu0 0
    %894 = vmatprep.subr.bf16.mxu0 0
    %895 = vmatpush1.bf16.msra.mxu0 0
    %896 = vmatprep.subr.bf16.mxu0 0
    %897 = vmatpush1.bf16.msra.mxu0 0
    %898 = vmatprep.subr.bf16.mxu0 0
    %899 = vmatpush1.bf16.msra.mxu0 0
    %900 = vmatprep.subr.bf16.mxu0 0
    %901 = vmatpush1.bf16.msra.mxu0 0
    %902 = vmatprep.subr.bf16.mxu0 0
    %903 = vmatpush1.bf16.msra.mxu0 0
    %904 = vmatprep.subr.bf16.mxu0 0
    %905 = vmatpush1.bf16.msra.mxu0 0
    %906 = vmatprep.mubr.bf16.mxu0 0
    %907 = vmatmul.mubr.bf16.gmra.mrb[0].mxu0 %v872
    %v908 = vpop.f32.mrb[0].mxu0
    %v909 = vadd.f32 0.0, %v908
    %v910 = vpop.f32.mrb[0].mxu0
    %v911 = vadd.f32 0.0, %v910
    %v912 = vpop.f32.mrb[0].mxu0
    %v913 = vpop.f32.mrb[0].mxu0
    %914 = vdwg.mxu0
    %v915 = vadd.f32 %v868, %v909
    %v916 = vadd.f32 %v869, %v911
    %v917 = vxor.u32 %v915, 2147483648
    %v918 = vxor.u32 %v916, 2147483648
    %v919 = vmul.f32 %v917, 1.442695
    %v920 = vpow.pop %v919
    %v921 = vmul.f32 %v918, 1.442695
    %v922 = vpow.pop %v921
    %v923 = vadd.f32 %v920, 1.0
    %v924 = vadd.f32 %v922, 1.0
    %v925 = vrcp.pop %v923
    %v926 = vmul.f32 1.0, %v925
    %v927 = vrcp.pop %v924
    %v928 = vmul.f32 1.0, %v927
    %v929 = vtanh.pop %v916
    %v930 = vmul.f32 %v926, %v861
    %932 = vrot.lane.b32.xlu0 %v929, 64
    %v933 = vpop.permute.xlu0 %932
    %v935 = vmul.f32 %v926, %v933
    %937 = vrot.lane.b32.xlu0 %v935, 64
    %v938 = vpop.permute.xlu0 %937
    %v940 = vadd.f32 %v930, %v938
    %v941 = vtanh.pop %v940
    %943 = vrot.lane.b32.xlu0 %v941, 64
    %v944 = vpop.permute.xlu0 %943
    %v946 = vmul.f32 %v928, %v944
    %v947 = vld [vmem:[#allocation2 + $0x70] sm:$0xff]
    %v948 = vld [vmem:[#allocation2 + $0x78] sm:$0xff]
    %v949 = vpack.c.bf16 %v946, %v946
    %v951 = vsel %vm245, %v949, 0
    %953 = vmatprep.subr.bf16.mxu0 %v382
    %954 = vmatpush1.bf16.msra.mxu0 %v381
    %955 = vmatprep.subr.bf16.mxu0 %v384
    %956 = vmatpush1.bf16.msra.mxu0 %v383
    %957 = vmatprep.subr.bf16.mxu0 %v386
    %958 = vmatpush1.bf16.msra.mxu0 %v385
    %959 = vmatprep.subr.bf16.mxu0 %v388
    %960 = vmatpush1.bf16.msra.mxu0 %v387
    %961 = vmatprep.subr.bf16.mxu0 0
    %962 = vmatpush1.bf16.msra.mxu0 0
    %963 = vmatprep.subr.bf16.mxu0 0
    %964 = vmatpush1.bf16.msra.mxu0 0
    %965 = vmatprep.subr.bf16.mxu0 0
    %966 = vmatpush1.bf16.msra.mxu0 0
    %967 = vmatprep.subr.bf16.mxu0 0
    %968 = vmatpush1.bf16.msra.mxu0 0
    %969 = vmatprep.subr.bf16.mxu0 0
    %970 = vmatpush1.bf16.msra.mxu0 0
    %971 = vmatprep.subr.bf16.mxu0 0
    %972 = vmatpush1.bf16.msra.mxu0 0
    %973 = vmatprep.subr.bf16.mxu0 0
    %974 = vmatpush1.bf16.msra.mxu0 0
    %975 = vmatprep.subr.bf16.mxu0 0
    %976 = vmatpush1.bf16.msra.mxu0 0
    %977 = vmatprep.subr.bf16.mxu0 0
    %978 = vmatpush1.bf16.msra.mxu0 0
    %979 = vmatprep.subr.bf16.mxu0 0
    %980 = vmatpush1.bf16.msra.mxu0 0
    %981 = vmatprep.subr.bf16.mxu0 0
    %982 = vmatpush1.bf16.msra.mxu0 0
    %983 = vmatprep.subr.bf16.mxu0 0
    %984 = vmatpush1.bf16.msra.mxu0 0
    %985 = vmatprep.mubr.bf16.mxu0 0
    %986 = vmatmul.mubr.bf16.gmra.mrb[0].mxu0 %v951
    %v987 = vpop.f32.mrb[0].mxu0
    %v988 = vadd.f32 0.0, %v987
    %v989 = vpop.f32.mrb[0].mxu0
    %v990 = vadd.f32 0.0, %v989
    %v991 = vpop.f32.mrb[0].mxu0
    %v992 = vpop.f32.mrb[0].mxu0
    %993 = vdwg.mxu0
    %v994 = vadd.f32 %v947, %v988
    %v995 = vadd.f32 %v948, %v990
    %v996 = vxor.u32 %v994, 2147483648
    %v997 = vxor.u32 %v995, 2147483648
    %v998 = vmul.f32 %v996, 1.442695
    %v999 = vpow.pop %v998
    %v1000 = vmul.f32 %v997, 1.442695
    %v1001 = vpow.pop %v1000
    %v1002 = vadd.f32 %v999, 1.0
    %v1003 = vadd.f32 %v1001, 1.0
    %v1004 = vrcp.pop %v1002
    %v1005 = vmul.f32 1.0, %v1004
    %v1006 = vrcp.pop %v1003
    %v1007 = vmul.f32 1.0, %v1006
    %v1008 = vtanh.pop %v995
    %v1009 = vmul.f32 %v1005, %v940
    %1011 = vrot.lane.b32.xlu0 %v1008, 64
    %v1012 = vpop.permute.xlu0 %1011
    %v1014 = vmul.f32 %v1005, %v1012
    %1016 = vrot.lane.b32.xlu0 %v1014, 64
    %v1017 = vpop.permute.xlu0 %1016
    %v1019 = vadd.f32 %v1009, %v1017
    %v1020 = vtanh.pop %v1019
    %1022 = vrot.lane.b32.xlu0 %v1020, 64
    %v1023 = vpop.permute.xlu0 %1022
    %v1025 = vmul.f32 %v1007, %v1023
    %v1026 = vpack.c.bf16 %v551, %v472
    %v1027 = vpack.c.bf16 %v709, %v630
    %v1028 = vpack.c.bf16 %v867, %v788
    %v1029 = vpack.c.bf16 %v1025, %v946
    %v1030 = vld [vmem:[%s6] sm:$0xf]
    %v1031 = vld [vmem:[%s6 + $0x4] sm:$0xf]
    %v1032 = vld [vmem:[%s6 + $0x8] sm:$0xf]
    %v1033 = vld [vmem:[%s6 + $0xc] sm:$0xf]
    %v1034 = vld [vmem:[%s6 + $0x10] sm:$0xf]
    %v1035 = vld [vmem:[%s6 + $0x14] sm:$0xf]
    %v1036 = vld [vmem:[%s6 + $0x18] sm:$0xf]
    %v1037 = vld [vmem:[%s6 + $0x1c] sm:$0xf]
    %v1038 = vld [vmem:[%s7] sm:$0x1]
    %v1040 = vlaneseq
    %v1041 = vshrl.u32 %v1040, 7
    %v1042 = vsub.s32 0, %v1041
    %v1043 = vrot.slane %v1038, %v1042
    %v1053 = vunpack.c.l.b16 %v1030
    %v1054 = vunpack.c.l.b16 %v1031
    %v1055 = vunpack.c.l.b16 %v1032
    %v1056 = vunpack.c.l.b16 %v1033
    %v1057 = vunpack.c.l.b16 %v1034
    %v1058 = vunpack.c.l.b16 %v1035
    %v1059 = vunpack.c.l.b16 %v1036
    %v1060 = vunpack.c.l.b16 %v1037
    %v1061 = vpack.c.b16 %v1054, %v1053
    %v1062 = vpack.c.b16 %v1056, %v1055
    %v1063 = vpack.c.b16 %v1058, %v1057
    %v1064 = vpack.c.b16 %v1060, %v1059
    %v1070 = vsel %vm245, %v1026, 0
    %v1073 = vsel %vm245, %v1027, 0
    %v1076 = vsel %vm245, %v1028, 0
    %v1079 = vsel %vm245, %v1029, 0
    %1081 = vmatprep.subr.bf16.mxu0 0
    %1082 = vmatpush1.bf16.msra.mxu0 %v1061
    %1083 = vmatprep.subr.bf16.mxu0 0
    %1084 = vmatpush1.bf16.msra.mxu0 %v1062
    %1085 = vmatprep.subr.bf16.mxu0 0
    %1086 = vmatpush1.bf16.msra.mxu0 %v1063
    %1087 = vmatprep.subr.bf16.mxu0 0
    %1088 = vmatpush1.bf16.msra.mxu0 %v1064
    %1089 = vmatprep.subr.bf16.mxu0 0
    %1090 = vmatpush1.bf16.msra.mxu0 0
    %1091 = vmatprep.subr.bf16.mxu0 0
    %1092 = vmatpush1.bf16.msra.mxu0 0
    %1093 = vmatprep.subr.bf16.mxu0 0
    %1094 = vmatpush1.bf16.msra.mxu0 0
    %1095 = vmatprep.subr.bf16.mxu0 0
    %1096 = vmatpush1.bf16.msra.mxu0 0
    %1097 = vmatprep.subr.bf16.mxu0 0
    %1098 = vmatpush1.bf16.msra.mxu0 0
    %1099 = vmatprep.subr.bf16.mxu0 0
    %1100 = vmatpush1.bf16.msra.mxu0 0
    %1101 = vmatprep.subr.bf16.mxu0 0
    %1102 = vmatpush1.bf16.msra.mxu0 0
    %1103 = vmatprep.subr.bf16.mxu0 0
    %1104 = vmatpush1.bf16.msra.mxu0 0
    %1105 = vmatprep.subr.bf16.mxu0 0
    %1106 = vmatpush1.bf16.msra.mxu0 0
    %1107 = vmatprep.subr.bf16.mxu0 0
    %1108 = vmatpush1.bf16.msra.mxu0 0
    %1109 = vmatprep.subr.bf16.mxu0 0
    %1110 = vmatpush1.bf16.msra.mxu0 0
    %1111 = vmatprep.subr.bf16.mxu0 0
    %1112 = vmatpush1.bf16.msra.mxu0 0
    %1113 = vmatprep.mubr.bf16.mxu0 0
    %1114 = vmatmul.mubr.bf16.gmra.mrb[0].mxu0 %v1070
    %v1115 = vpop.f32.mrb[0].mxu0
    %v1116 = vadd.f32 %v1043, %v1115
    %v1117 = vpop.f32.mrb[0].mxu0
    %v1118 = vpop.f32.mrb[0].mxu0
    %v1119 = vadd.f32 %v1043, %v1118
    %v1120 = vpop.f32.mrb[0].mxu0
    %1121 = vmatprep.mubr.bf16.mxu0 0
    %1122 = vmatmul.mubr.bf16.gmra.mrb[0].mxu0 %v1073
    %v1123 = vpop.f32.mrb[0].mxu0
    %v1124 = vadd.f32 %v1043, %v1123
    %v1125 = vpop.f32.mrb[0].mxu0
    %v1126 = vpop.f32.mrb[0].mxu0
    %v1127 = vadd.f32 %v1043, %v1126
    %v1128 = vpop.f32.mrb[0].mxu0
    %1129 = vmatprep.mubr.bf16.mxu0 0
    %1130 = vmatmul.mubr.bf16.gmra.mrb[0].mxu0 %v1076
    %v1131 = vpop.f32.mrb[0].mxu0
    %v1132 = vadd.f32 %v1043, %v1131
    %v1133 = vpop.f32.mrb[0].mxu0
    %v1134 = vpop.f32.mrb[0].mxu0
    %v1135 = vadd.f32 %v1043, %v1134
    %v1136 = vpop.f32.mrb[0].mxu0
    %1137 = vmatprep.mubr.bf16.mxu0 0
    %1138 = vmatmul.mubr.bf16.gmra.mrb[0].mxu0 %v1079
    %v1139 = vpop.f32.mrb[0].mxu0
    %v1140 = vadd.f32 %v1043, %v1139
    %v1141 = vpop.f32.mrb[0].mxu0
    %v1142 = vpop.f32.mrb[0].mxu0
    %v1143 = vadd.f32 %v1043, %v1142
    %v1144 = vpop.f32.mrb[0].mxu0
    %1145 = vdwg.mxu0
    %v1146 = vlaneseq
    %v1147 = vand.u32 %v1146, 127
    %vm1148 = vcmp.lt.s32.totalorder %v1147, 2
    %vm1149 = vcmp.ge.s32.totalorder %v1147, 2
    %vm1150 = vcmp.lt.s32.totalorder %v1147, 9
    %vm1151 = vmand %vm1149, %vm1150
    %vm1152 = vcmp.ge.s32.totalorder %v1147, 9
    %vm1153 = vcmp.lt.s32.totalorder %v1147, 33
    %vm1154 = vmand %vm1152, %vm1153
    %vm1155 = vmor %vm1151, %vm1154
    %v1156 = vsel %vm1151, %v1116, -1e+30
    %v1157 = vsel %vm1151, %v1119, -1e+30
    %v1158 = vsel %vm1151, %v1124, -1e+30
    %v1159 = vsel %vm1151, %v1127, -1e+30
    %v1160 = vsel %vm1151, %v1132, -1e+30
    %v1161 = vsel %vm1151, %v1135, -1e+30
    %v1162 = vsel %vm1151, %v1140, -1e+30
    %v1163 = vsel %vm1151, %v1143, -1e+30
    %1164 = vmax.xlane.f32.xlu0 %v1156
    %v1165 = vpop.xlane.xlu0 %1164
    %1166 = vmax.xlane.f32.xlu0 %v1157
    %v1167 = vpop.xlane.xlu0 %1166
    %1168 = vmax.xlane.f32.xlu0 %v1158
    %v1169 = vpop.xlane.xlu0 %1168
    %1170 = vmax.xlane.f32.xlu0 %v1159
    %v1171 = vpop.xlane.xlu0 %1170
    %1172 = vmax.xlane.f32.xlu0 %v1160
    %v1173 = vpop.xlane.xlu0 %1172
    %1174 = vmax.xlane.f32.xlu0 %v1161
    %v1175 = vpop.xlane.xlu0 %1174
    %1176 = vmax.xlane.f32.xlu0 %v1162
    %v1177 = vpop.xlane.xlu0 %1176
    %1178 = vmax.xlane.f32.xlu0 %v1163
    %v1179 = vpop.xlane.xlu0 %1178
    %v1180 = vsel %vm1154, %v1116, -1e+30
    %v1181 = vsel %vm1154, %v1119, -1e+30
    %v1182 = vsel %vm1154, %v1124, -1e+30
    %v1183 = vsel %vm1154, %v1127, -1e+30
    %v1184 = vsel %vm1154, %v1132, -1e+30
    %v1185 = vsel %vm1154, %v1135, -1e+30
    %v1186 = vsel %vm1154, %v1140, -1e+30
    %v1187 = vsel %vm1154, %v1143, -1e+30
    %1188 = vmax.xlane.f32.xlu0 %v1180
    %v1189 = vpop.xlane.xlu0 %1188
    %1190 = vmax.xlane.f32.xlu0 %v1181
    %v1191 = vpop.xlane.xlu0 %1190
    %1192 = vmax.xlane.f32.xlu0 %v1182
    %v1193 = vpop.xlane.xlu0 %1192
    %1194 = vmax.xlane.f32.xlu0 %v1183
    %v1195 = vpop.xlane.xlu0 %1194
    %1196 = vmax.xlane.f32.xlu0 %v1184
    %v1197 = vpop.xlane.xlu0 %1196
    %1198 = vmax.xlane.f32.xlu0 %v1185
    %v1199 = vpop.xlane.xlu0 %1198
    %1200 = vmax.xlane.f32.xlu0 %v1186
    %v1201 = vpop.xlane.xlu0 %1200
    %1202 = vmax.xlane.f32.xlu0 %v1187
    %v1203 = vpop.xlane.xlu0 %1202
    %v1204 = vsel %vm1151, %v1165, %v1189
    %v1205 = vsel %vm1151, %v1167, %v1191
    %v1206 = vsel %vm1151, %v1169, %v1193
    %v1207 = vsel %vm1151, %v1171, %v1195
    %v1208 = vsel %vm1151, %v1173, %v1197
    %v1209 = vsel %vm1151, %v1175, %v1199
    %v1210 = vsel %vm1151, %v1177, %v1201
    %v1211 = vsel %vm1151, %v1179, %v1203
    %v1212 = vsel %vm1155, %v1116, -1e+30
    %v1213 = vsel %vm1155, %v1119, -1e+30
    %v1214 = vsel %vm1155, %v1124, -1e+30
    %v1215 = vsel %vm1155, %v1127, -1e+30
    %v1216 = vsel %vm1155, %v1132, -1e+30
    %v1217 = vsel %vm1155, %v1135, -1e+30
    %v1218 = vsel %vm1155, %v1140, -1e+30
    %v1219 = vsel %vm1155, %v1143, -1e+30
    %v1220 = vsub.f32 %v1212, %v1204
    %v1221 = vsub.f32 %v1213, %v1205
    %v1222 = vsub.f32 %v1214, %v1206
    %v1223 = vsub.f32 %v1215, %v1207
    %v1224 = vsub.f32 %v1216, %v1208
    %v1225 = vsub.f32 %v1217, %v1209
    %v1226 = vsub.f32 %v1218, %v1210
    %v1227 = vsub.f32 %v1219, %v1211
    %v1228 = vmul.f32 %v1220, 1.442695
    %v1229 = vpow.pop %v1228
    %v1230 = vmul.f32 %v1221, 1.442695
    %v1231 = vpow.pop %v1230
    %v1232 = vmul.f32 %v1222, 1.442695
    %v1233 = vpow.pop %v1232
    %v1234 = vmul.f32 %v1223, 1.442695
    %v1235 = vpow.pop %v1234
    %v1236 = vmul.f32 %v1224, 1.442695
    %v1237 = vpow.pop %v1236
    %v1238 = vmul.f32 %v1225, 1.442695
    %v1239 = vpow.pop %v1238
    %v1240 = vmul.f32 %v1226, 1.442695
    %v1241 = vpow.pop %v1240
    %v1242 = vmul.f32 %v1227, 1.442695
    %v1243 = vpow.pop %v1242
    %v1244 = vsel %vm1151, %v1229, 0.0
    %v1245 = vsel %vm1151, %v1231, 0.0
    %v1246 = vsel %vm1151, %v1233, 0.0
    %v1247 = vsel %vm1151, %v1235, 0.0
    %v1248 = vsel %vm1151, %v1237, 0.0
    %v1249 = vsel %vm1151, %v1239, 0.0
    %v1250 = vsel %vm1151, %v1241, 0.0
    %v1251 = vsel %vm1151, %v1243, 0.0
    %1252 = vadd.xlane.f32.xlu0 %v1244
    %v1253 = vpop.xlane.xlu0 %1252
    %1254 = vadd.xlane.f32.xlu0 %v1245
    %v1255 = vpop.xlane.xlu0 %1254
    %1256 = vadd.xlane.f32.xlu0 %v1246
    %v1257 = vpop.xlane.xlu0 %1256
    %1258 = vadd.xlane.f32.xlu0 %v1247
    %v1259 = vpop.xlane.xlu0 %1258
    %1260 = vadd.xlane.f32.xlu0 %v1248
    %v1261 = vpop.xlane.xlu0 %1260
    %1262 = vadd.xlane.f32.xlu0 %v1249
    %v1263 = vpop.xlane.xlu0 %1262
    %1264 = vadd.xlane.f32.xlu0 %v1250
    %v1265 = vpop.xlane.xlu0 %1264
    %1266 = vadd.xlane.f32.xlu0 %v1251
    %v1267 = vpop.xlane.xlu0 %1266
    %v1268 = vsel %vm1154, %v1229, 0.0
    %v1269 = vsel %vm1154, %v1231, 0.0
    %v1270 = vsel %vm1154, %v1233, 0.0
    %v1271 = vsel %vm1154, %v1235, 0.0
    %v1272 = vsel %vm1154, %v1237, 0.0
    %v1273 = vsel %vm1154, %v1239, 0.0
    %v1274 = vsel %vm1154, %v1241, 0.0
    %v1275 = vsel %vm1154, %v1243, 0.0
    %1276 = vadd.xlane.f32.xlu0 %v1268
    %v1277 = vpop.xlane.xlu0 %1276
    %1278 = vadd.xlane.f32.xlu0 %v1269
    %v1279 = vpop.xlane.xlu0 %1278
    %1280 = vadd.xlane.f32.xlu0 %v1270
    %v1281 = vpop.xlane.xlu0 %1280
    %1282 = vadd.xlane.f32.xlu0 %v1271
    %v1283 = vpop.xlane.xlu0 %1282
    %1284 = vadd.xlane.f32.xlu0 %v1272
    %v1285 = vpop.xlane.xlu0 %1284
    %1286 = vadd.xlane.f32.xlu0 %v1273
    %v1287 = vpop.xlane.xlu0 %1286
    %1288 = vadd.xlane.f32.xlu0 %v1274
    %v1289 = vpop.xlane.xlu0 %1288
    %1290 = vadd.xlane.f32.xlu0 %v1275
    %v1291 = vpop.xlane.xlu0 %1290
    %v1292 = vsel %vm1151, %v1253, %v1277
    %v1293 = vsel %vm1151, %v1255, %v1279
    %v1294 = vsel %vm1151, %v1257, %v1281
    %v1295 = vsel %vm1151, %v1259, %v1283
    %v1296 = vsel %vm1151, %v1261, %v1285
    %v1297 = vsel %vm1151, %v1263, %v1287
    %v1298 = vsel %vm1151, %v1265, %v1289
    %v1299 = vsel %vm1151, %v1267, %v1291
    %v1300 = vrcp.pop %v1292
    %v1301 = vrcp.pop %v1293
    %v1302 = vrcp.pop %v1294
    %v1303 = vrcp.pop %v1295
    %v1304 = vrcp.pop %v1296
    %v1305 = vrcp.pop %v1297
    %v1306 = vrcp.pop %v1298
    %v1307 = vrcp.pop %v1299
    %v1308 = vmul.f32 %v1229, %v1300
    %v1309 = vmul.f32 %v1231, %v1301
    %v1310 = vmul.f32 %v1233, %v1302
    %v1311 = vmul.f32 %v1235, %v1303
    %v1312 = vmul.f32 %v1237, %v1304
    %v1313 = vmul.f32 %v1239, %v1305
    %v1314 = vmul.f32 %v1241, %v1306
    %v1315 = vmul.f32 %v1243, %v1307
    %v1316 = vtanh.pop %v1116
    %v1317 = vtanh.pop %v1119
    %v1318 = vtanh.pop %v1124
    %v1319 = vtanh.pop %v1127
    %v1320 = vtanh.pop %v1132
    %v1321 = vtanh.pop %v1135
    %v1322 = vtanh.pop %v1140
    %v1323 = vtanh.pop %v1143
    %v1324 = vsel %vm1148, %v1316, %v1308
    %v1325 = vsel %vm1148, %v1317, %v1309
    %v1326 = vsel %vm1148, %v1318, %v1310
    %v1327 = vsel %vm1148, %v1319, %v1311
    %v1328 = vsel %vm1148, %v1320, %v1312
    %v1329 = vsel %vm1148, %v1321, %v1313
    %v1330 = vsel %vm1148, %v1322, %v1314
    %v1331 = vsel %vm1148, %v1323, %v1315
    %1332 = vst [vmem:[%s8] sm:$0xff] %v1324
    %1333 = vst [vmem:[%s8 + $0x8] sm:$0xff] %v1325
    %1334 = vst [vmem:[%s8 + $0x10] sm:$0xff] %v1326
    %1335 = vst [vmem:[%s8 + $0x18] sm:$0xff] %v1327
    %1336 = vst [vmem:[%s8 + $0x20] sm:$0xff] %v1328
    %1337 = vst [vmem:[%s8 + $0x28] sm:$0xff] %v1329
    %1338 = vst [vmem:[%s8 + $0x30] sm:$0xff] %v1330
    %1339 = vst [vmem:[%s8 + $0x38] sm:$0xff] %v1331
    // Predicated region
    $region38: #{generator_forward.1} parent=1 // pred_check
      _
    $region39: #{generator_forward.1} parent=1 // pred_check_branch
      %1341 = sbr.rel (0) target = $region41
    $region40: #{generator_forward.1} parent=1 // pred_region
      _
    $region41: #{generator_forward.1} parent=1 // pred_fallthru
      _
    // Predicated region
    $region42: #{generator_forward.1} parent=1 // pred_check
      _
    $region43: #{generator_forward.1} parent=1 // pred_check_branch
      %1343 = sbr.rel (0) target = $region45
    $region44: #{generator_forward.1} parent=1 // pred_region
      _
    $region45: #{generator_forward.1} parent=1 // pred_fallthru
      _
    %1344 = vsyncpa [#allocation4], 1

</llo_original>
